<compile_context>
chip_gen: v7x
topology: tpu7x:2x2x1
jax: 0.10.0
libtpu: 0.0.40
codegen_flags: <defaults>
</compile_context>

<pallas_src>
import numpy as np
import jax
import jax.numpy as jnp
from jax import lax
from jax.experimental import pallas as pl
from jax.experimental.pallas import tpu as pltpu

_HI = lax.Precision.HIGHEST


def _multiple_as_kernel(a_ref, mask_ref, out_ref):
    A = a_ref[...]                                   # (Bt, n, n) f32, symmetric
    mask = mask_ref[...][:, 0, :]                    # (Bt, n) f32, 1.0 at targets
    Bt, n, _ = A.shape

    # N_j = rowsum_j(A); lane (axis=-1) reduce, result (Bt, n) lane-dense.
    N = jnp.sum(A, axis=-1)                          # (Bt, n)

    # diag(A^3)_j = sum_i (A@A)_ij * A_ij.  A symmetric => (A@A)*A symmetric,
    # so the sum over i can also be taken along the lane axis (no transpose).
    A2 = jnp.einsum("bij,bjk->bik", A, A,
                    preferred_element_type=jnp.float32,
                    precision=_HI)                   # batched MXU matmul
    diag3 = jnp.sum(A2 * A, axis=-1)                 # (Bt, n)
    E = N + 0.5 * diag3                              # (Bt, n)

    # OLS of logE on [1, logN] via explicit 2x2 normal equations, per graph.
    # The four reductions are fused into a single lane-reduce over (4*Bt, n).
    # NOTE: assumes no zero-degree node (same assumption as the torch code).
    logN = jnp.log(N)
    logE = jnp.log(E)
    stats = jnp.concatenate(
        [logN, logN * logN, logE, logN * logE], axis=0)       # (4*Bt, n)
    sums = jnp.sum(stats, axis=-1, keepdims=True)             # (4*Bt, 1)
    sx, sxx = sums[0 * Bt:1 * Bt], sums[1 * Bt:2 * Bt]        # (Bt, 1) each
    sy, sxy = sums[2 * Bt:3 * Bt], sums[3 * Bt:4 * Bt]
    s1 = jnp.float32(n)
    det = s1 * sxx - sx * sx
    b = (sxx * sy - sx * sxy) / det                  # theta[0], (Bt, 1)
    w = (s1 * sxy - sx * sy) / det                   # theta[1], (Bt, 1)

    # Residual sum of squares over target nodes; single fused exp.
    resid = jnp.exp(b + w * logN) - E                # (Bt, n)
    rss = jnp.sum(mask * resid * resid, axis=-1, keepdims=True)   # (Bt, 1)
    # TODO(synk): when Bt is a multiple of 128, transpose to a (1, Bt)
    # lane-dense row before storing instead of this tiny masked store.
    out_ref[...] = rss[None, :, :]                   # (1, Bt, 1)


def _vmem_limit_bytes(bt, n):
    """Generation-aware scoped-VMEM limit with ~15% headroom."""
    try:
        cap = int(pltpu.get_tpu_info().vmem_capacity_bytes)
    except Exception:
        cap = 64 << 20                               # conservative: v7x per-TC VMEM
    budget = int(cap * 0.85)                         # headroom for Mosaic scratch
    # Per-step residency: double-buffered A block + A@A + a few (Bt, n) temps.
    need = 4 * bt * n * n * 4 + (2 << 20)
    return min(budget, max(32 << 20, need))


def multiple_as_forward_batched(A_batch, mask_batch, *, graphs_per_step=None):
    """A_batch: (B, n, n) symmetric adjacencies; mask_batch: (B, 1, n) masks.

    Returns a (B,) vector of per-graph residual sums of squares.
    """
    B, n, _ = A_batch.shape
    Bt = int(graphs_per_step) if graphs_per_step else min(B, 8)
    Bt = max(1, min(Bt, B))

    # Pad the batch to a multiple of Bt (repeat the last graph; padded results
    # are discarded -- padding with zeros would inject NaNs via log(0)).
    G = -(-B // Bt)
    B_pad = G * Bt
    A_b = A_batch.astype(jnp.float32)
    m_b = mask_batch.astype(jnp.float32)
    if B_pad != B:
        pad = B_pad - B
        A_b = jnp.concatenate([A_b, jnp.repeat(A_b[-1:], pad, axis=0)], axis=0)
        m_b = jnp.concatenate([m_b, jnp.repeat(m_b[-1:], pad, axis=0)], axis=0)

    cost = pl.CostEstimate(
        flops=12 * B_pad * n ** 3,                   # ~6 bf16 MXU passes (HIGHEST)
        transcendentals=3 * B_pad * n,               # log, log, exp per node
        bytes_accessed=B_pad * (n * n + n + 1) * 4,
    )

    out = pl.pallas_call(
        _multiple_as_kernel,
        out_shape=jax.ShapeDtypeStruct((G, Bt, 1), jnp.float32),
        grid=(G,),
        in_specs=[
            pl.BlockSpec((Bt, n, n), lambda g: (g, 0, 0)),
            pl.BlockSpec((Bt, 1, n), lambda g: (g, 0, 0)),
        ],
        out_specs=pl.BlockSpec((1, Bt, 1), lambda g: (g, 0, 0)),
        compiler_params=pltpu.CompilerParams(
            dimension_semantics=("parallel",),
            vmem_limit_bytes=_vmem_limit_bytes(Bt, n),
        ),
        cost_estimate=cost,
    )(A_b, m_b)
    return out.reshape(B_pad)[:B]                    # (B,)


def target_mask(target_lst, n):
    return jnp.zeros((1, n), jnp.float32).at[0, jnp.asarray(target_lst)].set(1.0)


def multiple_as_forward(A, target_lst):
    # Single-graph API matching the torch module's forward() -> shape (1,).
    n = A.shape[0]
    out = multiple_as_forward_batched(A[None], target_mask(target_lst, n)[None],
                                      graphs_per_step=1)
    return out.reshape(1)


def adjacency_from_tri(tri_idx, edge, n):
    # torch.sparse_coo_tensor(...).to_dense() sums duplicate entries -> scatter-add.
    A = jnp.zeros((n, n), dtype=jnp.float32)
    A = A.at[tri_idx[:, 0], tri_idx[:, 1]].add(edge)
    A = A + A.T - jnp.diag(jnp.diag(A))
    return A


def reference_forward(A, target_lst):
    # Pure-JAX reference mirroring the PyTorch code line by line.  All matmuls
    # forced to f32 accuracy (bf16/DEFAULT precision error is amplified by the
    # near-cancelling residuals -- the documented earlier failure mode).
    N = jnp.sum(A, 1).reshape(-1, 1)
    A3 = jnp.matmul(jnp.matmul(A, A, precision=_HI), A, precision=_HI)
    E = jnp.sum(A, 1) + 0.5 * jnp.diag(A3)
    logN = jnp.log(N)
    logE = jnp.log(E)
    logN1 = jnp.concatenate([jnp.ones((logN.shape[0], 1), jnp.float32), logN], 1)
    xtx = jnp.matmul(logN1.T, logN1, precision=_HI)
    xty = jnp.matmul(logN1.T, logE, precision=_HI)
    theta = jnp.matmul(jnp.linalg.inv(xtx), xty, precision=_HI)
    b, w = theta[0], theta[1]
    tmp = 0.0
    for i in target_lst:
        tmp = tmp + (jnp.exp(b) * N[i, 0] ** w - E[i]) ** 2
    return tmp


if __name__ == "__main__":
    n_node = 16
    # 8 independent graphs, 4 per grid step -> 2 "parallel" grid steps (even,
    # >= 2: keeps both v7x TensorCores busy and amortizes per-step overhead).
    target_lists = [
        [0, 3, 7, 12], [1, 5, 9, 14], [2, 6, 10, 15], [0, 4, 8, 13],
        [1, 3, 11, 14], [2, 5, 7, 12], [0, 6, 9, 15], [3, 8, 10, 13],
    ]
    graphs_per_step = 4

    # Deterministic synthetic triplet lists: all undirected edges i < j with
    # positive weights (the nn.Parameter `edge` values).  Per-node "activities"
    # give heterogeneous degrees so the log-log OLS fit is well conditioned.
    idx = np.array([(i, j) for i in range(n_node) for j in range(i + 1, n_node)],
                   dtype=np.int32)                   # (120, 2)
    key = jax.random.PRNGKey(0)

    A_list, mask_list = [], []
    for tgt in target_lists:
        key, k_act, k_u = jax.random.split(key, 3)
        act = jax.random.normal(k_act, (n_node,), dtype=jnp.float32)
        u = jax.random.uniform(k_u, (idx.shape[0],), minval=0.5, maxval=1.5,
                               dtype=jnp.float32)
        edge = jnp.exp(act[idx[:, 0]] + act[idx[:, 1]]) * u
        A_list.append(adjacency_from_tri(jnp.asarray(idx), edge, n_node))
        mask_list.append(target_mask(tgt, n_node))

    A_batch = jnp.stack(A_list)                      # (8, 16, 16)
    mask_batch = jnp.stack(mask_list)                # (8, 1, 16)

    # Batched kernel call (4 graphs per "parallel" grid step, 2 steps).
    out = jax.block_until_ready(
        multiple_as_forward_batched(A_batch, mask_batch,
                                    graphs_per_step=graphs_per_step))

    # Single-graph API, matching the torch forward's shape-(1,) result.
    out0 = jax.block_until_ready(multiple_as_forward(A_list[0], target_lists[0]))

    ref = np.array([float(jax.block_until_ready(
        reference_forward(A_list[g], target_lists[g])))
        for g in range(len(A_list))], dtype=np.float32)

    np.testing.assert_allclose(np.asarray(out), ref, rtol=2e-3, atol=1e-3)
    np.testing.assert_allclose(np.asarray(out0), ref[0:1], rtol=2e-3, atol=1e-3)

    print("KERNEL_OK")
</pallas_src>

<mosaic_0001>
module attributes {stable_mosaic.version = 11 : i64} {
  func.func @_multiple_as_kernel(%arg0: i32, %arg1: memref<4x16x16xf32, #tpu.memory_space<vmem>>, %arg2: memref<4x1x16xf32, #tpu.memory_space<vmem>>, %arg3: memref<1x4x1xf32, #tpu.memory_space<vmem>>) attributes {dimension_semantics = [#tpu.dimension_semantics<parallel>], iteration_bounds = array<i64: 2>, scalar_prefetch = 0 : i64, scratch_operands = 0 : i64, tpu.core_type = #tpu.core_type<tc>, window_params = [{transform_indices = @transform_0, window_bounds = array<i64: 4, 16, 16>}, {transform_indices = @transform_1, window_bounds = array<i64: 4, 1, 16>}, {transform_indices = @transform_2, window_bounds = array<i64: 1, 4, 1>}]} {
    %c0 = arith.constant 0 : index
    %c0_0 = arith.constant 0 : index
    %c0_1 = arith.constant 0 : index
    %0 = vector.load %arg1[%c0, %c0_0, %c0_1] : memref<4x16x16xf32, #tpu.memory_space<vmem>>, vector<4x16x16xf32>
    %c0_2 = arith.constant 0 : index
    %c0_3 = arith.constant 0 : index
    %c0_4 = arith.constant 0 : index
    %1 = vector.load %arg2[%c0_2, %c0_3, %c0_4] : memref<4x1x16xf32, #tpu.memory_space<vmem>>, vector<4x1x16xf32>
    %2 = vector.shape_cast %1 : vector<4x1x16xf32> to vector<4x16xf32>
    %cst = arith.constant dense<0.000000e+00> : vector<4x16xf32>
    %3 = vector.multi_reduction <add>, %0, %cst [2] : vector<4x16x16xf32> to vector<4x16xf32>
    "tpu.trace_start"() <{level = 10 : i32, message = "bij,bjk->bik"}> : () -> ()
    %cst_5 = arith.constant dense<0.000000e+00> : vector<4x16x16xf32>
    %4 = tpu.matmul %0, %0, %cst_5 {dimension_numbers = #tpu.dot_dimension_numbers<[2], [1], [1], [2], [0, 0, 0, 1, 1, 2], [0], [0]>, precision = #tpu.contract_precision<fp32>} : vector<4x16x16xf32>, vector<4x16x16xf32>, vector<4x16x16xf32> -> vector<4x16x16xf32>
    "tpu.trace_stop"() : () -> ()
    %5 = arith.mulf %4, %0 : vector<4x16x16xf32>
    %cst_6 = arith.constant dense<0.000000e+00> : vector<4x16xf32>
    %6 = vector.multi_reduction <add>, %5, %cst_6 [2] : vector<4x16x16xf32> to vector<4x16xf32>
    %cst_7 = arith.constant 5.000000e-01 : f32
    %7 = vector.broadcast %cst_7 : f32 to vector<4x16xf32>
    %8 = arith.mulf %7, %6 : vector<4x16xf32>
    %9 = arith.addf %3, %8 : vector<4x16xf32>
    %10 = math.log %3 : vector<4x16xf32>
    %11 = math.log %9 : vector<4x16xf32>
    %12 = arith.mulf %10, %10 : vector<4x16xf32>
    %13 = arith.mulf %10, %11 : vector<4x16xf32>
    %14 = tpu.concatenate %10, %12, %11, %13 in 0 : vector<4x16xf32>, vector<4x16xf32>, vector<4x16xf32>, vector<4x16xf32> -> vector<16x16xf32>
    %cst_8 = arith.constant dense<0.000000e+00> : vector<16xf32>
    %15 = vector.multi_reduction <add>, %14, %cst_8 [1] : vector<16x16xf32> to vector<16xf32>
    %16 = vector.shape_cast %15 : vector<16xf32> to vector<16x1xf32>
    %17 = vector.extract_strided_slice %16 {offsets = [0, 0], sizes = [4, 1], strides = [1, 1]} : vector<16x1xf32> to vector<4x1xf32>
    %18 = vector.extract_strided_slice %16 {offsets = [4, 0], sizes = [4, 1], strides = [1, 1]} : vector<16x1xf32> to vector<4x1xf32>
    %19 = vector.extract_strided_slice %16 {offsets = [8, 0], sizes = [4, 1], strides = [1, 1]} : vector<16x1xf32> to vector<4x1xf32>
    %20 = vector.extract_strided_slice %16 {offsets = [12, 0], sizes = [4, 1], strides = [1, 1]} : vector<16x1xf32> to vector<4x1xf32>
    %cst_9 = arith.constant 1.600000e+01 : f32
    %21 = vector.broadcast %cst_9 : f32 to vector<4x1xf32>
    %22 = arith.mulf %21, %18 : vector<4x1xf32>
    %23 = arith.mulf %17, %17 : vector<4x1xf32>
    %24 = arith.subf %22, %23 : vector<4x1xf32>
    %25 = arith.mulf %18, %19 : vector<4x1xf32>
    %26 = arith.mulf %17, %20 : vector<4x1xf32>
    %27 = arith.subf %25, %26 : vector<4x1xf32>
    %28 = arith.divf %27, %24 : vector<4x1xf32>
    %cst_10 = arith.constant 1.600000e+01 : f32
    %29 = vector.broadcast %cst_10 : f32 to vector<4x1xf32>
    %30 = arith.mulf %29, %20 : vector<4x1xf32>
    %31 = arith.mulf %17, %19 : vector<4x1xf32>
    %32 = arith.subf %30, %31 : vector<4x1xf32>
    %33 = arith.divf %32, %24 : vector<4x1xf32>
    %34 = vector.broadcast %33 : vector<4x1xf32> to vector<4x16xf32>
    %35 = arith.mulf %34, %10 : vector<4x16xf32>
    %36 = vector.broadcast %28 : vector<4x1xf32> to vector<4x16xf32>
    %37 = arith.addf %36, %35 : vector<4x16xf32>
    %38 = math.exp %37 : vector<4x16xf32>
    %39 = arith.subf %38, %9 : vector<4x16xf32>
    %40 = arith.mulf %2, %39 : vector<4x16xf32>
    %41 = arith.mulf %40, %39 : vector<4x16xf32>
    %cst_11 = arith.constant dense<0.000000e+00> : vector<4xf32>
    %42 = vector.multi_reduction <add>, %41, %cst_11 [1] : vector<4x16xf32> to vector<4xf32>
    %43 = vector.shape_cast %42 : vector<4xf32> to vector<4x1xf32>
    %44 = vector.shape_cast %43 : vector<4x1xf32> to vector<1x4x1xf32>
    %c0_12 = arith.constant 0 : index
    %c0_13 = arith.constant 0 : index
    %c0_14 = arith.constant 0 : index
    %45 = vector.load %arg3[%c0_12, %c0_13, %c0_14] : memref<1x4x1xf32, #tpu.memory_space<vmem>>, vector<1x4x1xf32>
    tpu.vector_store %arg3[%c0_12, %c0_13, %c0_14], %44 {strides = array<i32>} : memref<1x4x1xf32, #tpu.memory_space<vmem>>, vector<1x4x1xf32>,
    return
  }
  func.func @transform_0(%arg0: i32) -> (i32, i32, i32) {
    %c0_i32 = arith.constant 0 : i32
    %c0_i32_0 = arith.constant 0 : i32
    %c0_i32_1 = arith.constant 0 : i32
    return %arg0, %c0_i32, %c0_i32_0 : i32, i32, i32
  }
  func.func @transform_1(%arg0: i32) -> (i32, i32, i32) {
    %c0_i32 = arith.constant 0 : i32
    %c0_i32_0 = arith.constant 0 : i32
    %c0_i32_1 = arith.constant 0 : i32
    return %arg0, %c0_i32, %c0_i32_0 : i32, i32, i32
  }
  func.func @transform_2(%arg0: i32) -> (i32, i32, i32) {
    %c0_i32 = arith.constant 0 : i32
    %c0_i32_0 = arith.constant 0 : i32
    %c0_i32_1 = arith.constant 0 : i32
    return %arg0, %c0_i32, %c0_i32_0 : i32, i32, i32
  }
}

</mosaic_0001>

<llo_original>
// kernel: tpu_custom_call.1
$region0: #{tpu_custom_call.1}
  #allocation0 [shape = 'u32[]', space=smem, size = 0x4, offset = 0x4, fixed_abs, tag = 'smem constant byte address 0x4 - core index']
  #allocation1 [shape = 'u32[144,128]{1,0:T(1,128)}', space=vmem, size = 0x12000, scoped, tag = 'internal scratch']
  %s0 = inlined_call_operand.hbm [shape: f32[8,16,16], index: 0, kind: input, shape index: {}]
  %s1 = inlined_call_operand.hbm [shape: f32[8,1,16], index: 1, kind: input, shape index: {}]
  %s2 = inlined_call_operand.vmem [shape: f32[2,4,1], index: 2, kind: output, shape index: {}]
  %s3 = sld [smem:[#allocation0]]
  $region49: #{tpu_custom_call.1} parent=0
    _
  %s5 = ssub.s32 1, %s3
  %s6 = scalar_select 0, %s5, %s3
  $region1: #{tpu_custom_call.1} parent=0
    #allocation2 [shape = 'u8[65536]{0}', space=vmem, size = 0x10000, scoped, tag = 'input window, operand 0']
    #allocation3 [shape = 's32[2]{0}', space=sflag, size = 0x8, scoped, tag = 'scoped memory for tpu_custom_call.1']
    #allocation4 [shape = 'u8[4096]{0}', space=vmem, size = 0x1000, scoped, tag = 'input window, operand 1']
    #allocation5 [shape = 's32[2]{0}', space=sflag, size = 0x8, scoped, tag = 'scoped memory for tpu_custom_call.1']
    %7 = vsyncpa [#allocation3], 0
    %s8 = scalar_lea.sflag [#allocation3], 1
    %9 = vsyncpa %s8, 0
    %10 = vsyncpa [#allocation5], 0
    %s11 = scalar_lea.sflag [#allocation5], 1
    %12 = vsyncpa %s11, 0
    loop: start=0, step=1, limit=4
    $region2: #{tpu_custom_call.1} parent=1 // loop_pre_header
      _
    $region3: #{tpu_custom_call.1} parent=1 // loop_header
      %s14 = sphi 0, %s18
      %p15 = scmp.ge.s32.totalorder %s14, 4
      %s24 = sphi 0, %s26
      %s27 = sphi 0, %s24
      %s28 = sphi 0, %s27
      %s44 = sphi 0, %s28
      %s50 = sphi 0, %s52
      %s53 = sphi 0, %s50
      %s54 = sphi 0, %s53
      %s70 = sphi 0, %s54
      %s76 = sphi 0, %s78
      %s79 = sphi 0, %s76
      %s80 = sphi 0, %s79
      %s96 = sphi 0, %s80
    $region4: #{tpu_custom_call.1} parent=1 // loop_header_branch
      %17 = sbr.rel (%p15) target = $region8
    $region5: #{tpu_custom_call.1} parent=1 // loop_body
      %s19 = ssub.s32 %s14, 1
      %s20 = ssub.s32 %s14, 2
      %s21 = sadd.s32 %s14, 1
      %s22 = ssub.s32 %s14, %s21
      %p23 = scmp.eq.s32.totalorder %s22, 0
      %s25 = sadd.s32 %s24, 1
      %s26 = scalar_select %p23, %s24, %s25
      %p29 = pneg %p23
      %p30 = scmp.eq.s32.totalorder %s14, 1
      %p31 = por %p29, %p30
      %p32 = scmp.ne.s32.totalorder %s24, %s27
      %p33 = scmp.eq.s32.totalorder %s14, 0
      %p34 = por %p32, %p33
      %p35 = scmp.ne.s32.totalorder %s24, %s27
      %p36 = scmp.eq.s32.totalorder %s19, 1
      %p37 = por %p35, %p36
      %p38 = scmp.ne.s32.totalorder %s27, %s28
      %p39 = scmp.eq.s32.totalorder %s19, 0
      %p40 = por %p38, %p39
      %p41 = scmp.ne.s32.totalorder %s27, %s28
      %p42 = scmp.eq.s32.totalorder %s20, 1
      %p43 = por %p41, %p42
      %p45 = scmp.ne.s32.totalorder %s28, %s44
      %p46 = scmp.eq.s32.totalorder %s20, 0
      %p47 = por %p45, %p46
      %s48 = ssub.s32 %s14, %s21
      %p49 = scmp.eq.s32.totalorder %s48, 0
      %s51 = sadd.s32 %s50, 1
      %s52 = scalar_select %p49, %s50, %s51
      %p55 = pneg %p49
      %p56 = scmp.eq.s32.totalorder %s14, 1
      %p57 = por %p55, %p56
      %p58 = scmp.ne.s32.totalorder %s50, %s53
      %p59 = scmp.eq.s32.totalorder %s14, 0
      %p60 = por %p58, %p59
      %p61 = scmp.ne.s32.totalorder %s50, %s53
      %p62 = scmp.eq.s32.totalorder %s19, 1
      %p63 = por %p61, %p62
      %p64 = scmp.ne.s32.totalorder %s53, %s54
      %p65 = scmp.eq.s32.totalorder %s19, 0
      %p66 = por %p64, %p65
      %p67 = scmp.ne.s32.totalorder %s53, %s54
      %p68 = scmp.eq.s32.totalorder %s20, 1
      %p69 = por %p67, %p68
      %p71 = scmp.ne.s32.totalorder %s54, %s70
      %p72 = scmp.eq.s32.totalorder %s20, 0
      %p73 = por %p71, %p72
      %s74 = ssub.s32 %s14, %s21
      %p75 = scmp.eq.s32.totalorder %s74, 0
      %s77 = sadd.s32 %s76, 1
      %s78 = scalar_select %p75, %s76, %s77
      %p81 = pneg %p75
      %p82 = scmp.eq.s32.totalorder %s14, 1
      %p83 = por %p81, %p82
      %p84 = scmp.ne.s32.totalorder %s76, %s79
      %p85 = scmp.eq.s32.totalorder %s14, 0
      %p86 = por %p84, %p85
      %p87 = scmp.ne.s32.totalorder %s76, %s79
      %p88 = scmp.eq.s32.totalorder %s19, 1
      %p89 = por %p87, %p88
      %p90 = scmp.ne.s32.totalorder %s79, %s80
      %p91 = scmp.eq.s32.totalorder %s19, 0
      %p92 = por %p90, %p91
      %p93 = scmp.ne.s32.totalorder %s79, %s80
      %p94 = scmp.eq.s32.totalorder %s20, 1
      %p95 = por %p93, %p94
      %p97 = scmp.ne.s32.totalorder %s80, %s96
      %p98 = scmp.eq.s32.totalorder %s20, 0
      %p99 = por %p97, %p98
      %p100 = scmp.le.s32.totalorder 1, %s14
      %p101 = scmp.lt.s32.totalorder %s14, 3
      %p102 = pnand %p100, %p101
      %p103 = pneg %p102
      // Predicated region
      $region9: #{tpu_custom_call.1} parent=5 // pred_check
        _
      $region10: #{tpu_custom_call.1} parent=5 // pred_check_branch
        %105 = sbr.rel (%p102) target = $region12
      $region11: #{tpu_custom_call.1} parent=5 // pred_region
        %s106 = ssub.s32 %s14, 1
      $region12: #{tpu_custom_call.1} parent=5 // pred_fallthru
        _
      %p107 = scmp.lt.s32.totalorder %s14, 2
      // Predicated region
      $region13: #{tpu_custom_call.1} parent=5 // pred_check
        %p108 = pneg %p107
      $region14: #{tpu_custom_call.1} parent=5 // pred_check_branch
        %110 = sbr.rel (%p108) target = $region16
      $region15: #{tpu_custom_call.1} parent=5 // pred_region
        // Predicated region
        $region17: #{tpu_custom_call.1} parent=15 // pred_check
          %p111 = pneg %p34
        $region18: #{tpu_custom_call.1} parent=15 // pred_check_branch
          %113 = sbr.rel (%p111) target = $region20
        $region19: #{tpu_custom_call.1} parent=15 // pred_region
          %s114 = sand.u32 %s24, 1
          %s115 = scalar_lea.sflag [#allocation3], %s114
          %s116 = sand.u32 %s24, 1
          %s117 = smul.addr %s116, 64
          %s118 = scalar_lea.vmem [#allocation2], %s117
          %s119 = smul.u32 4, %s14
          %s121 = ssub.s32 1024, 1024
          %122 = vsyncadd %s115, %s121
          %s123 = smul.addr %s119, 2
          %s124 = smul.addr %s123, 128
          %s125 = scalar_lea.hbm %s0, %s124
          %s126 = sshll.u32 %s118, 4
          %s127 = int_to_ptr.vmem [resolvable:$true] %s126
          %132 = dma.hbm_to_vmem [thread:$0]  %s125, 1024, %s127, %s115, 128, 128, 8
        $region20: #{tpu_custom_call.1} parent=15 // pred_fallthru
          _
        // Predicated region
        $region21: #{tpu_custom_call.1} parent=15 // pred_check
          %p133 = pneg %p60
        $region22: #{tpu_custom_call.1} parent=15 // pred_check_branch
          %135 = sbr.rel (%p133) target = $region24
        $region23: #{tpu_custom_call.1} parent=15 // pred_region
          %s136 = sand.u32 %s50, 1
          %s137 = scalar_lea.sflag [#allocation5], %s136
          %s138 = sand.u32 %s50, 1
          %s139 = smul.addr %s138, 4
          %s140 = scalar_lea.vmem [#allocation4], %s139
          %s141 = smul.u32 4, %s14
          %s143 = ssub.s32 64, 64
          %144 = vsyncadd %s137, %s143
          %s145 = smul.addr %s141, 16
          %s146 = scalar_lea.hbm %s1, %s145
          %s147 = sshll.u32 %s140, 4
          %s148 = int_to_ptr.vmem [resolvable:$true] %s147
          %153 = dma.hbm_to_vmem [thread:$0]  %s146, 64, %s148, %s137, 16, 16, 1
        $region24: #{tpu_custom_call.1} parent=15 // pred_fallthru
          _
      $region16: #{tpu_custom_call.1} parent=5 // pred_fallthru
        _
      %p154 = scmp.le.s32.totalorder 1, %s14
      %p155 = scmp.lt.s32.totalorder %s14, 3
      %p156 = pnand %p154, %p155
      %p157 = pneg %p156
      // Predicated region
      $region25: #{tpu_custom_call.1} parent=5 // pred_check
        _
      $region26: #{tpu_custom_call.1} parent=5 // pred_check_branch
        %159 = sbr.rel (%p156) target = $region28
      $region27: #{tpu_custom_call.1} parent=5 // pred_region
        %s160 = ssub.s32 %s14, 1
        %s161 = sand.u32 %s27, 1
        %s162 = scalar_lea.sflag [#allocation3], %s161
        %s163 = sand.u32 %s27, 1
        %s164 = smul.addr %s163, 64
        %s165 = scalar_lea.vmem [#allocation2], %s164
        // Predicated region
        $region29: #{tpu_custom_call.1} parent=27 // pred_check
          %p166 = pneg %p40
        $region30: #{tpu_custom_call.1} parent=27 // pred_check_branch
          %168 = sbr.rel (%p166) target = $region32
        $region31: #{tpu_custom_call.1} parent=27 // pred_region
          %169 = dma.done %s162, 1024
        $region32: #{tpu_custom_call.1} parent=27 // pred_fallthru
          _
        %s170 = sand.u32 %s53, 1
        %s171 = scalar_lea.sflag [#allocation5], %s170
        %s172 = sand.u32 %s53, 1
        %s173 = smul.addr %s172, 4
        %s174 = scalar_lea.vmem [#allocation4], %s173
        // Predicated region
        $region33: #{tpu_custom_call.1} parent=27 // pred_check
          %p175 = pneg %p66
        $region34: #{tpu_custom_call.1} parent=27 // pred_check_branch
          %177 = sbr.rel (%p175) target = $region36
        $region35: #{tpu_custom_call.1} parent=27 // pred_region
          %178 = dma.done %s171, 64
        $region36: #{tpu_custom_call.1} parent=27 // pred_fallthru
          _
        %s179 = sand.u32 %s27, 1
        %s180 = scalar_lea.sflag [#allocation3], %s179
        %s181 = sand.u32 %s27, 1
        %s182 = smul.addr %s181, 64
        %s183 = scalar_lea.vmem [#allocation2], %s182
        %p184 = pneg %p40
        %p185 = pneg %p37
        %s186 = sand.u32 %s53, 1
        %s187 = scalar_lea.sflag [#allocation5], %s186
        %s188 = sand.u32 %s53, 1
        %s189 = smul.addr %s188, 4
        %s190 = scalar_lea.vmem [#allocation4], %s189
        %p191 = pneg %p66
        %p192 = pneg %p63
        %p193 = pneg %p92
        %p194 = pneg %p89
        %p195 = scmp.lt.s32.totalorder %s19, 1
        %s196 = scalar_select %p195, %s19, 1
        %s197 = smul.addr %s196, 4
        %s198 = scalar_lea.vmem %s2, %s197
        %s199 = smul.u32 4, %s19
        %s200 = smul.u32 4, %s19
        %p201 = scmp.lt.s32.totalorder %s19, 1
        %s202 = scalar_select %p201, %s19, 1
        %s203 = smul.addr %s202, 4
        %s204 = scalar_lea.vmem %s2, %s203
        %v205 = vld [vmem:[%s165] sm:$0xff]
        %v206 = vld [vmem:[%s165 + $0x8] sm:$0xff]
        %v207 = vld [vmem:[%s165 + $0x10] sm:$0xff]
        %v208 = vld [vmem:[%s165 + $0x18] sm:$0xff]
        %v209 = vld [vmem:[%s165 + $0x20] sm:$0xff]
        %v210 = vld [vmem:[%s165 + $0x28] sm:$0xff]
        %v211 = vld [vmem:[%s165 + $0x30] sm:$0xff]
        %v212 = vld [vmem:[%s165 + $0x38] sm:$0xff]
        %v213 = vld [vmem:[%s174] sm:$0x1]
        %v214 = vld [vmem:[%s174 + $0x1] sm:$0x1]
        %v215 = vld [vmem:[%s174 + $0x2] sm:$0x1]
        %v216 = vld [vmem:[%s174 + $0x3] sm:$0x1]
        %vm217 = vcmask 130048
        %v218 = vsel %vm217, %v205, 0.0
        %219 = vadd.xlane.f32.xlu0 %v218
        %v220 = vpop.xlane.xlu0 %219
        %v221 = vsel %vm217, %v206, 0.0
        %222 = vadd.xlane.f32.xlu0 %v221
        %v223 = vpop.xlane.xlu0 %222
        %v224 = vsel %vm217, %v207, 0.0
        %225 = vadd.xlane.f32.xlu0 %v224
        %v226 = vpop.xlane.xlu0 %225
        %v227 = vsel %vm217, %v208, 0.0
        %228 = vadd.xlane.f32.xlu0 %v227
        %v229 = vpop.xlane.xlu0 %228
        %v230 = vsel %vm217, %v209, 0.0
        %231 = vadd.xlane.f32.xlu0 %v230
        %v232 = vpop.xlane.xlu0 %231
        %v233 = vsel %vm217, %v210, 0.0
        %234 = vadd.xlane.f32.xlu0 %v233
        %v235 = vpop.xlane.xlu0 %234
        %v236 = vsel %vm217, %v211, 0.0
        %237 = vadd.xlane.f32.xlu0 %v236
        %v238 = vpop.xlane.xlu0 %237
        %v239 = vsel %vm217, %v212, 0.0
        %240 = vadd.xlane.f32.xlu0 %v239
        %v241 = vpop.xlane.xlu0 %240
        %v243 = vsel %vm217, %v205, 0
        %v246 = vsel %vm217, %v206, 0
        %248 = vmatprep.subr.mxu0 0.0
        %v249 = vand.u32 %v205, 4294901760
        %250 = vmatpush1.msra.mxu0 %v249
        %251 = vmatprep.subr.mxu0 0.0
        %v252 = vand.u32 %v206, 4294901760
        %253 = vmatpush1.msra.mxu0 %v252
        %254 = vmatprep.subr.mxu0 0.0
        %255 = vmatpush1.msra.mxu0 0.0
        %256 = vmatprep.subr.mxu0 0.0
        %257 = vmatpush1.msra.mxu0 0.0
        %258 = vmatprep.subr.mxu0 0.0
        %259 = vmatpush1.msra.mxu0 0.0
        %260 = vmatprep.subr.mxu0 0.0
        %261 = vmatpush1.msra.mxu0 0.0
        %262 = vmatprep.subr.mxu0 0.0
        %263 = vmatpush1.msra.mxu0 0.0
        %264 = vmatprep.subr.mxu0 0.0
        %265 = vmatpush1.msra.mxu0 0.0
        %266 = vmatprep.subr.mxu0 0.0
        %267 = vmatpush1.msra.mxu0 0.0
        %268 = vmatprep.subr.mxu0 0.0
        %269 = vmatpush1.msra.mxu0 0.0
        %270 = vmatprep.subr.mxu0 0.0
        %271 = vmatpush1.msra.mxu0 0.0
        %272 = vmatprep.subr.mxu0 0.0
        %273 = vmatpush1.msra.mxu0 0.0
        %274 = vmatprep.subr.mxu0 0.0
        %275 = vmatpush1.msra.mxu0 0.0
        %276 = vmatprep.subr.mxu0 0.0
        %277 = vmatpush1.msra.mxu0 0.0
        %278 = vmatprep.subr.mxu0 0.0
        %279 = vmatpush1.msra.mxu0 0.0
        %280 = vmatprep.subr.mxu0 0.0
        %281 = vmatpush1.msra.mxu0 0.0
        %282 = vmatprep.subr.mxu0 0.0
        %283 = vmatpush1.msra.mxu0 0.0
        %284 = vmatprep.subr.mxu0 0.0
        %285 = vmatpush1.msra.mxu0 0.0
        %286 = vmatprep.subr.mxu0 0.0
        %287 = vmatpush1.msra.mxu0 0.0
        %288 = vmatprep.subr.mxu0 0.0
        %289 = vmatpush1.msra.mxu0 0.0
        %290 = vmatprep.subr.mxu0 0.0
        %291 = vmatpush1.msra.mxu0 0.0
        %292 = vmatprep.subr.mxu0 0.0
        %293 = vmatpush1.msra.mxu0 0.0
        %294 = vmatprep.subr.mxu0 0.0
        %295 = vmatpush1.msra.mxu0 0.0
        %296 = vmatprep.subr.mxu0 0.0
        %297 = vmatpush1.msra.mxu0 0.0
        %298 = vmatprep.subr.mxu0 0.0
        %299 = vmatpush1.msra.mxu0 0.0
        %300 = vmatprep.subr.mxu0 0.0
        %301 = vmatpush1.msra.mxu0 0.0
        %302 = vmatprep.subr.mxu0 0.0
        %303 = vmatpush1.msra.mxu0 0.0
        %304 = vmatprep.subr.mxu0 0.0
        %305 = vmatpush1.msra.mxu0 0.0
        %306 = vmatprep.subr.mxu0 0.0
        %307 = vmatpush1.msra.mxu0 0.0
        %308 = vmatprep.subr.mxu0 0.0
        %309 = vmatpush1.msra.mxu0 0.0
        %310 = vmatprep.subr.mxu0 0.0
        %311 = vmatpush1.msra.mxu0 0.0
        %312 = vmatprep.subr.mxu0 0.0
        %313 = vmatpush1.msra.mxu0 0.0
        %314 = vmatprep.mubr.f32.mxu0 0.0
        %v315 = vand.u32 %v243, 4294901760
        %v316 = vsub.f32 %v243, %v315
        %v317 = vand.u32 %v316, 4294901760
        %v318 = vsub.f32 %v316, %v317
        %v319 = vand.u32 %v318, 4294901760
        %320 = vmatmul.mubr.f32.gmra.mrb[0].mxu0 %v319
        %v321 = vpop.f32.mrb[0].mxu0
        %v322 = vadd.f32 0.0, %v321
        %v323 = vpop.f32.mrb[0].mxu0
        %324 = vmatprep.mubr.f32.mxu0 0.0
        %v325 = vand.u32 %v246, 4294901760
        %v326 = vsub.f32 %v246, %v325
        %v327 = vand.u32 %v326, 4294901760
        %v328 = vsub.f32 %v326, %v327
        %v329 = vand.u32 %v328, 4294901760
        %330 = vmatmul.mubr.f32.gmra.mrb[0].mxu0 %v329
        %v331 = vpop.f32.mrb[0].mxu0
        %v332 = vadd.f32 0.0, %v331
        %v333 = vpop.f32.mrb[0].mxu0
        %334 = vdwg.mxu0
        %335 = vmatprep.subr.mxu0 0.0
        %v336 = vand.u32 %v205, 4294901760
        %v337 = vsub.f32 %v205, %v336
        %v338 = vand.u32 %v337, 4294901760
        %v339 = vsub.f32 %v337, %v338
        %v340 = vand.u32 %v339, 4294901760
        %341 = vmatpush1.msra.mxu0 %v340
        %342 = vmatprep.subr.mxu0 0.0
        %v343 = vand.u32 %v206, 4294901760
        %v344 = vsub.f32 %v206, %v343
        %v345 = vand.u32 %v344, 4294901760
        %v346 = vsub.f32 %v344, %v345
        %v347 = vand.u32 %v346, 4294901760
        %348 = vmatpush1.msra.mxu0 %v347
        %349 = vmatprep.subr.mxu0 0.0
        %350 = vmatpush1.msra.mxu0 0.0
        %351 = vmatprep.subr.mxu0 0.0
        %352 = vmatpush1.msra.mxu0 0.0
        %353 = vmatprep.subr.mxu0 0.0
        %354 = vmatpush1.msra.mxu0 0.0
        %355 = vmatprep.subr.mxu0 0.0
        %356 = vmatpush1.msra.mxu0 0.0
        %357 = vmatprep.subr.mxu0 0.0
        %358 = vmatpush1.msra.mxu0 0.0
        %359 = vmatprep.subr.mxu0 0.0
        %360 = vmatpush1.msra.mxu0 0.0
        %361 = vmatprep.subr.mxu0 0.0
        %362 = vmatpush1.msra.mxu0 0.0
        %363 = vmatprep.subr.mxu0 0.0
        %364 = vmatpush1.msra.mxu0 0.0
        %365 = vmatprep.subr.mxu0 0.0
        %366 = vmatpush1.msra.mxu0 0.0
        %367 = vmatprep.subr.mxu0 0.0
        %368 = vmatpush1.msra.mxu0 0.0
        %369 = vmatprep.subr.mxu0 0.0
        %370 = vmatpush1.msra.mxu0 0.0
        %371 = vmatprep.subr.mxu0 0.0
        %372 = vmatpush1.msra.mxu0 0.0
        %373 = vmatprep.subr.mxu0 0.0
        %374 = vmatpush1.msra.mxu0 0.0
        %375 = vmatprep.subr.mxu0 0.0
        %376 = vmatpush1.msra.mxu0 0.0
        %377 = vmatprep.subr.mxu0 0.0
        %378 = vmatpush1.msra.mxu0 0.0
        %379 = vmatprep.subr.mxu0 0.0
        %380 = vmatpush1.msra.mxu0 0.0
        %381 = vmatprep.subr.mxu0 0.0
        %382 = vmatpush1.msra.mxu0 0.0
        %383 = vmatprep.subr.mxu0 0.0
        %384 = vmatpush1.msra.mxu0 0.0
        %385 = vmatprep.subr.mxu0 0.0
        %386 = vmatpush1.msra.mxu0 0.0
        %387 = vmatprep.subr.mxu0 0.0
        %388 = vmatpush1.msra.mxu0 0.0
        %389 = vmatprep.subr.mxu0 0.0
        %390 = vmatpush1.msra.mxu0 0.0
        %391 = vmatprep.subr.mxu0 0.0
        %392 = vmatpush1.msra.mxu0 0.0
        %393 = vmatprep.subr.mxu0 0.0
        %394 = vmatpush1.msra.mxu0 0.0
        %395 = vmatprep.subr.mxu0 0.0
        %396 = vmatpush1.msra.mxu0 0.0
        %397 = vmatprep.subr.mxu0 0.0
        %398 = vmatpush1.msra.mxu0 0.0
        %399 = vmatprep.subr.mxu0 0.0
        %400 = vmatpush1.msra.mxu0 0.0
        %401 = vmatprep.subr.mxu0 0.0
        %402 = vmatpush1.msra.mxu0 0.0
        %403 = vmatprep.subr.mxu0 0.0
        %404 = vmatpush1.msra.mxu0 0.0
        %405 = vmatprep.subr.mxu0 0.0
        %406 = vmatpush1.msra.mxu0 0.0
        %407 = vmatprep.subr.mxu0 0.0
        %408 = vmatpush1.msra.mxu0 0.0
        %409 = vmatprep.mubr.f32.mxu0 0.0
        %v410 = vand.u32 %v243, 4294901760
        %411 = vmatmul.mubr.f32.gmra.mrb[0].mxu0 %v410
        %v412 = vpop.f32.mrb[0].mxu0
        %v413 = vadd.f32 %v322, %v412
        %v414 = vpop.f32.mrb[0].mxu0
        %415 = vmatprep.mubr.f32.mxu0 0.0
        %v416 = vand.u32 %v246, 4294901760
        %417 = vmatmul.mubr.f32.gmra.mrb[0].mxu0 %v416
        %v418 = vpop.f32.mrb[0].mxu0
        %v419 = vadd.f32 %v332, %v418
        %v420 = vpop.f32.mrb[0].mxu0
        %421 = vdwg.mxu0
        %422 = vmatprep.subr.mxu0 0.0
        %v423 = vand.u32 %v205, 4294901760
        %v424 = vsub.f32 %v205, %v423
        %425 = vmatpush1.msra.mxu0 %v424
        %426 = vmatprep.subr.mxu0 0.0
        %v427 = vand.u32 %v206, 4294901760
        %v428 = vsub.f32 %v206, %v427
        %429 = vmatpush1.msra.mxu0 %v428
        %430 = vmatprep.subr.mxu0 0.0
        %431 = vmatpush1.msra.mxu0 0.0
        %432 = vmatprep.subr.mxu0 0.0
        %433 = vmatpush1.msra.mxu0 0.0
        %434 = vmatprep.subr.mxu0 0.0
        %435 = vmatpush1.msra.mxu0 0.0
        %436 = vmatprep.subr.mxu0 0.0
        %437 = vmatpush1.msra.mxu0 0.0
        %438 = vmatprep.subr.mxu0 0.0
        %439 = vmatpush1.msra.mxu0 0.0
        %440 = vmatprep.subr.mxu0 0.0
        %441 = vmatpush1.msra.mxu0 0.0
        %442 = vmatprep.subr.mxu0 0.0
        %443 = vmatpush1.msra.mxu0 0.0
        %444 = vmatprep.subr.mxu0 0.0
        %445 = vmatpush1.msra.mxu0 0.0
        %446 = vmatprep.subr.mxu0 0.0
        %447 = vmatpush1.msra.mxu0 0.0
        %448 = vmatprep.subr.mxu0 0.0
        %449 = vmatpush1.msra.mxu0 0.0
        %450 = vmatprep.subr.mxu0 0.0
        %451 = vmatpush1.msra.mxu0 0.0
        %452 = vmatprep.subr.mxu0 0.0
        %453 = vmatpush1.msra.mxu0 0.0
        %454 = vmatprep.subr.mxu0 0.0
        %455 = vmatpush1.msra.mxu0 0.0
        %456 = vmatprep.subr.mxu0 0.0
        %457 = vmatpush1.msra.mxu0 0.0
        %458 = vmatprep.subr.mxu0 0.0
        %459 = vmatpush1.msra.mxu0 0.0
        %460 = vmatprep.subr.mxu0 0.0
        %461 = vmatpush1.msra.mxu0 0.0
        %462 = vmatprep.subr.mxu0 0.0
        %463 = vmatpush1.msra.mxu0 0.0
        %464 = vmatprep.subr.mxu0 0.0
        %465 = vmatpush1.msra.mxu0 0.0
        %466 = vmatprep.subr.mxu0 0.0
        %467 = vmatpush1.msra.mxu0 0.0
        %468 = vmatprep.subr.mxu0 0.0
        %469 = vmatpush1.msra.mxu0 0.0
        %470 = vmatprep.subr.mxu0 0.0
        %471 = vmatpush1.msra.mxu0 0.0
        %472 = vmatprep.subr.mxu0 0.0
        %473 = vmatpush1.msra.mxu0 0.0
        %474 = vmatprep.subr.mxu0 0.0
        %475 = vmatpush1.msra.mxu0 0.0
        %476 = vmatprep.subr.mxu0 0.0
        %477 = vmatpush1.msra.mxu0 0.0
        %478 = vmatprep.subr.mxu0 0.0
        %479 = vmatpush1.msra.mxu0 0.0
        %480 = vmatprep.subr.mxu0 0.0
        %481 = vmatpush1.msra.mxu0 0.0
        %482 = vmatprep.subr.mxu0 0.0
        %483 = vmatpush1.msra.mxu0 0.0
        %484 = vmatprep.subr.mxu0 0.0
        %485 = vmatpush1.msra.mxu0 0.0
        %486 = vmatprep.subr.mxu0 0.0
        %487 = vmatpush1.msra.mxu0 0.0
        %488 = vmatprep.subr.mxu0 0.0
        %489 = vmatpush1.msra.mxu0 0.0
        %490 = vmatprep.mubr.f32.mxu0 0.0
        %v491 = vand.u32 %v243, 4294901760
        %v492 = vsub.f32 %v243, %v491
        %493 = vmatmul.mubr.f32.gmra.mrb[0].mxu0 %v492
        %v494 = vpop.f32.mrb[0].mxu0
        %v495 = vadd.f32 %v413, %v494
        %v496 = vpop.f32.mrb[0].mxu0
        %497 = vmatprep.mubr.f32.mxu0 0.0
        %v498 = vand.u32 %v246, 4294901760
        %v499 = vsub.f32 %v246, %v498
        %500 = vmatmul.mubr.f32.gmra.mrb[0].mxu0 %v499
        %v501 = vpop.f32.mrb[0].mxu0
        %v502 = vadd.f32 %v419, %v501
        %v503 = vpop.f32.mrb[0].mxu0
        %504 = vdwg.mxu0
        %505 = vmatprep.subr.mxu0 0.0
        %v506 = vand.u32 %v205, 4294901760
        %507 = vmatpush1.msra.mxu0 %v506
        %508 = vmatprep.subr.mxu0 0.0
        %v509 = vand.u32 %v206, 4294901760
        %510 = vmatpush1.msra.mxu0 %v509
        %511 = vmatprep.subr.mxu0 0.0
        %512 = vmatpush1.msra.mxu0 0.0
        %513 = vmatprep.subr.mxu0 0.0
        %514 = vmatpush1.msra.mxu0 0.0
        %515 = vmatprep.subr.mxu0 0.0
        %516 = vmatpush1.msra.mxu0 0.0
        %517 = vmatprep.subr.mxu0 0.0
        %518 = vmatpush1.msra.mxu0 0.0
        %519 = vmatprep.subr.mxu0 0.0
        %520 = vmatpush1.msra.mxu0 0.0
        %521 = vmatprep.subr.mxu0 0.0
        %522 = vmatpush1.msra.mxu0 0.0
        %523 = vmatprep.subr.mxu0 0.0
        %524 = vmatpush1.msra.mxu0 0.0
        %525 = vmatprep.subr.mxu0 0.0
        %526 = vmatpush1.msra.mxu0 0.0
        %527 = vmatprep.subr.mxu0 0.0
        %528 = vmatpush1.msra.mxu0 0.0
        %529 = vmatprep.subr.mxu0 0.0
        %530 = vmatpush1.msra.mxu0 0.0
        %531 = vmatprep.subr.mxu0 0.0
        %532 = vmatpush1.msra.mxu0 0.0
        %533 = vmatprep.subr.mxu0 0.0
        %534 = vmatpush1.msra.mxu0 0.0
        %535 = vmatprep.subr.mxu0 0.0
        %536 = vmatpush1.msra.mxu0 0.0
        %537 = vmatprep.subr.mxu0 0.0
        %538 = vmatpush1.msra.mxu0 0.0
        %539 = vmatprep.subr.mxu0 0.0
        %540 = vmatpush1.msra.mxu0 0.0
        %541 = vmatprep.subr.mxu0 0.0
        %542 = vmatpush1.msra.mxu0 0.0
        %543 = vmatprep.subr.mxu0 0.0
        %544 = vmatpush1.msra.mxu0 0.0
        %545 = vmatprep.subr.mxu0 0.0
        %546 = vmatpush1.msra.mxu0 0.0
        %547 = vmatprep.subr.mxu0 0.0
        %548 = vmatpush1.msra.mxu0 0.0
        %549 = vmatprep.subr.mxu0 0.0
        %550 = vmatpush1.msra.mxu0 0.0
        %551 = vmatprep.subr.mxu0 0.0
        %552 = vmatpush1.msra.mxu0 0.0
        %553 = vmatprep.subr.mxu0 0.0
        %554 = vmatpush1.msra.mxu0 0.0
        %555 = vmatprep.subr.mxu0 0.0
        %556 = vmatpush1.msra.mxu0 0.0
        %557 = vmatprep.subr.mxu0 0.0
        %558 = vmatpush1.msra.mxu0 0.0
        %559 = vmatprep.subr.mxu0 0.0
        %560 = vmatpush1.msra.mxu0 0.0
        %561 = vmatprep.subr.mxu0 0.0
        %562 = vmatpush1.msra.mxu0 0.0
        %563 = vmatprep.subr.mxu0 0.0
        %564 = vmatpush1.msra.mxu0 0.0
        %565 = vmatprep.subr.mxu0 0.0
        %566 = vmatpush1.msra.mxu0 0.0
        %567 = vmatprep.subr.mxu0 0.0
        %568 = vmatpush1.msra.mxu0 0.0
        %569 = vmatprep.subr.mxu0 0.0
        %570 = vmatpush1.msra.mxu0 0.0
        %571 = vmatprep.mubr.f32.mxu0 0.0
        %v572 = vand.u32 %v243, 4294901760
        %v573 = vsub.f32 %v243, %v572
        %v574 = vand.u32 %v573, 4294901760
        %575 = vmatmul.mubr.f32.gmra.mrb[0].mxu0 %v574
        %v576 = vpop.f32.mrb[0].mxu0
        %v577 = vadd.f32 %v495, %v576
        %v578 = vpop.f32.mrb[0].mxu0
        %579 = vmatprep.mubr.f32.mxu0 0.0
        %v580 = vand.u32 %v246, 4294901760
        %v581 = vsub.f32 %v246, %v580
        %v582 = vand.u32 %v581, 4294901760
        %583 = vmatmul.mubr.f32.gmra.mrb[0].mxu0 %v582
        %v584 = vpop.f32.mrb[0].mxu0
        %v585 = vadd.f32 %v502, %v584
        %v586 = vpop.f32.mrb[0].mxu0
        %587 = vdwg.mxu0
        %588 = vmatprep.subr.mxu0 0.0
        %v589 = vand.u32 %v205, 4294901760
        %v590 = vsub.f32 %v205, %v589
        %v591 = vand.u32 %v590, 4294901760
        %592 = vmatpush1.msra.mxu0 %v591
        %593 = vmatprep.subr.mxu0 0.0
        %v594 = vand.u32 %v206, 4294901760
        %v595 = vsub.f32 %v206, %v594
        %v596 = vand.u32 %v595, 4294901760
        %597 = vmatpush1.msra.mxu0 %v596
        %598 = vmatprep.subr.mxu0 0.0
        %599 = vmatpush1.msra.mxu0 0.0
        %600 = vmatprep.subr.mxu0 0.0
        %601 = vmatpush1.msra.mxu0 0.0
        %602 = vmatprep.subr.mxu0 0.0
        %603 = vmatpush1.msra.mxu0 0.0
        %604 = vmatprep.subr.mxu0 0.0
        %605 = vmatpush1.msra.mxu0 0.0
        %606 = vmatprep.subr.mxu0 0.0
        %607 = vmatpush1.msra.mxu0 0.0
        %608 = vmatprep.subr.mxu0 0.0
        %609 = vmatpush1.msra.mxu0 0.0
        %610 = vmatprep.subr.mxu0 0.0
        %611 = vmatpush1.msra.mxu0 0.0
        %612 = vmatprep.subr.mxu0 0.0
        %613 = vmatpush1.msra.mxu0 0.0
        %614 = vmatprep.subr.mxu0 0.0
        %615 = vmatpush1.msra.mxu0 0.0
        %616 = vmatprep.subr.mxu0 0.0
        %617 = vmatpush1.msra.mxu0 0.0
        %618 = vmatprep.subr.mxu0 0.0
        %619 = vmatpush1.msra.mxu0 0.0
        %620 = vmatprep.subr.mxu0 0.0
        %621 = vmatpush1.msra.mxu0 0.0
        %622 = vmatprep.subr.mxu0 0.0
        %623 = vmatpush1.msra.mxu0 0.0
        %624 = vmatprep.subr.mxu0 0.0
        %625 = vmatpush1.msra.mxu0 0.0
        %626 = vmatprep.subr.mxu0 0.0
        %627 = vmatpush1.msra.mxu0 0.0
        %628 = vmatprep.subr.mxu0 0.0
        %629 = vmatpush1.msra.mxu0 0.0
        %630 = vmatprep.subr.mxu0 0.0
        %631 = vmatpush1.msra.mxu0 0.0
        %632 = vmatprep.subr.mxu0 0.0
        %633 = vmatpush1.msra.mxu0 0.0
        %634 = vmatprep.subr.mxu0 0.0
        %635 = vmatpush1.msra.mxu0 0.0
        %636 = vmatprep.subr.mxu0 0.0
        %637 = vmatpush1.msra.mxu0 0.0
        %638 = vmatprep.subr.mxu0 0.0
        %639 = vmatpush1.msra.mxu0 0.0
        %640 = vmatprep.subr.mxu0 0.0
        %641 = vmatpush1.msra.mxu0 0.0
        %642 = vmatprep.subr.mxu0 0.0
        %643 = vmatpush1.msra.mxu0 0.0
        %644 = vmatprep.subr.mxu0 0.0
        %645 = vmatpush1.msra.mxu0 0.0
        %646 = vmatprep.subr.mxu0 0.0
        %647 = vmatpush1.msra.mxu0 0.0
        %648 = vmatprep.subr.mxu0 0.0
        %649 = vmatpush1.msra.mxu0 0.0
        %650 = vmatprep.subr.mxu0 0.0
        %651 = vmatpush1.msra.mxu0 0.0
        %652 = vmatprep.subr.mxu0 0.0
        %653 = vmatpush1.msra.mxu0 0.0
        %654 = vmatprep.subr.mxu0 0.0
        %655 = vmatpush1.msra.mxu0 0.0
        %656 = vmatprep.subr.mxu0 0.0
        %657 = vmatpush1.msra.mxu0 0.0
        %658 = vmatprep.mubr.f32.mxu0 0.0
        %v659 = vand.u32 %v243, 4294901760
        %660 = vmatmul.mubr.f32.gmra.mrb[0].mxu0 %v659
        %v661 = vpop.f32.mrb[0].mxu0
        %v662 = vadd.f32 %v577, %v661
        %v663 = vpop.f32.mrb[0].mxu0
        %664 = vmatprep.mubr.f32.mxu0 0.0
        %v665 = vand.u32 %v246, 4294901760
        %666 = vmatmul.mubr.f32.gmra.mrb[0].mxu0 %v665
        %v667 = vpop.f32.mrb[0].mxu0
        %v668 = vadd.f32 %v585, %v667
        %v669 = vpop.f32.mrb[0].mxu0
        %670 = vdwg.mxu0
        %671 = vmatprep.subr.mxu0 0.0
        %v672 = vand.u32 %v205, 4294901760
        %673 = vmatpush1.msra.mxu0 %v672
        %674 = vmatprep.subr.mxu0 0.0
        %v675 = vand.u32 %v206, 4294901760
        %676 = vmatpush1.msra.mxu0 %v675
        %677 = vmatprep.subr.mxu0 0.0
        %678 = vmatpush1.msra.mxu0 0.0
        %679 = vmatprep.subr.mxu0 0.0
        %680 = vmatpush1.msra.mxu0 0.0
        %681 = vmatprep.subr.mxu0 0.0
        %682 = vmatpush1.msra.mxu0 0.0
        %683 = vmatprep.subr.mxu0 0.0
        %684 = vmatpush1.msra.mxu0 0.0
        %685 = vmatprep.subr.mxu0 0.0
        %686 = vmatpush1.msra.mxu0 0.0
        %687 = vmatprep.subr.mxu0 0.0
        %688 = vmatpush1.msra.mxu0 0.0
        %689 = vmatprep.subr.mxu0 0.0
        %690 = vmatpush1.msra.mxu0 0.0
        %691 = vmatprep.subr.mxu0 0.0
        %692 = vmatpush1.msra.mxu0 0.0
        %693 = vmatprep.subr.mxu0 0.0
        %694 = vmatpush1.msra.mxu0 0.0
        %695 = vmatprep.subr.mxu0 0.0
        %696 = vmatpush1.msra.mxu0 0.0
        %697 = vmatprep.subr.mxu0 0.0
        %698 = vmatpush1.msra.mxu0 0.0
        %699 = vmatprep.subr.mxu0 0.0
        %700 = vmatpush1.msra.mxu0 0.0
        %701 = vmatprep.subr.mxu0 0.0
        %702 = vmatpush1.msra.mxu0 0.0
        %703 = vmatprep.subr.mxu0 0.0
        %704 = vmatpush1.msra.mxu0 0.0
        %705 = vmatprep.subr.mxu0 0.0
        %706 = vmatpush1.msra.mxu0 0.0
        %707 = vmatprep.subr.mxu0 0.0
        %708 = vmatpush1.msra.mxu0 0.0
        %709 = vmatprep.subr.mxu0 0.0
        %710 = vmatpush1.msra.mxu0 0.0
        %711 = vmatprep.subr.mxu0 0.0
        %712 = vmatpush1.msra.mxu0 0.0
        %713 = vmatprep.subr.mxu0 0.0
        %714 = vmatpush1.msra.mxu0 0.0
        %715 = vmatprep.subr.mxu0 0.0
        %716 = vmatpush1.msra.mxu0 0.0
        %717 = vmatprep.subr.mxu0 0.0
        %718 = vmatpush1.msra.mxu0 0.0
        %719 = vmatprep.subr.mxu0 0.0
        %720 = vmatpush1.msra.mxu0 0.0
        %721 = vmatprep.subr.mxu0 0.0
        %722 = vmatpush1.msra.mxu0 0.0
        %723 = vmatprep.subr.mxu0 0.0
        %724 = vmatpush1.msra.mxu0 0.0
        %725 = vmatprep.subr.mxu0 0.0
        %726 = vmatpush1.msra.mxu0 0.0
        %727 = vmatprep.subr.mxu0 0.0
        %728 = vmatpush1.msra.mxu0 0.0
        %729 = vmatprep.subr.mxu0 0.0
        %730 = vmatpush1.msra.mxu0 0.0
        %731 = vmatprep.subr.mxu0 0.0
        %732 = vmatpush1.msra.mxu0 0.0
        %733 = vmatprep.subr.mxu0 0.0
        %734 = vmatpush1.msra.mxu0 0.0
        %735 = vmatprep.subr.mxu0 0.0
        %736 = vmatpush1.msra.mxu0 0.0
        %737 = vmatprep.mubr.f32.mxu0 0.0
        %v738 = vand.u32 %v243, 4294901760
        %739 = vmatmul.mubr.f32.gmra.mrb[0].mxu0 %v738
        %v740 = vpop.f32.mrb[0].mxu0
        %v741 = vadd.f32 %v662, %v740
        %v742 = vpop.f32.mrb[0].mxu0
        %743 = vmatprep.mubr.f32.mxu0 0.0
        %v744 = vand.u32 %v246, 4294901760
        %745 = vmatmul.mubr.f32.gmra.mrb[0].mxu0 %v744
        %v746 = vpop.f32.mrb[0].mxu0
        %v747 = vadd.f32 %v668, %v746
        %v748 = vpop.f32.mrb[0].mxu0
        %749 = vdwg.mxu0
        %v751 = vsel %vm217, %v207, 0
        %v754 = vsel %vm217, %v208, 0
        %756 = vmatprep.subr.mxu0 0.0
        %v757 = vand.u32 %v207, 4294901760
        %758 = vmatpush1.msra.mxu0 %v757
        %759 = vmatprep.subr.mxu0 0.0
        %v760 = vand.u32 %v208, 4294901760
        %761 = vmatpush1.msra.mxu0 %v760
        %762 = vmatprep.subr.mxu0 0.0
        %763 = vmatpush1.msra.mxu0 0.0
        %764 = vmatprep.subr.mxu0 0.0
        %765 = vmatpush1.msra.mxu0 0.0
        %766 = vmatprep.subr.mxu0 0.0
        %767 = vmatpush1.msra.mxu0 0.0
        %768 = vmatprep.subr.mxu0 0.0
        %769 = vmatpush1.msra.mxu0 0.0
        %770 = vmatprep.subr.mxu0 0.0
        %771 = vmatpush1.msra.mxu0 0.0
        %772 = vmatprep.subr.mxu0 0.0
        %773 = vmatpush1.msra.mxu0 0.0
        %774 = vmatprep.subr.mxu0 0.0
        %775 = vmatpush1.msra.mxu0 0.0
        %776 = vmatprep.subr.mxu0 0.0
        %777 = vmatpush1.msra.mxu0 0.0
        %778 = vmatprep.subr.mxu0 0.0
        %779 = vmatpush1.msra.mxu0 0.0
        %780 = vmatprep.subr.mxu0 0.0
        %781 = vmatpush1.msra.mxu0 0.0
        %782 = vmatprep.subr.mxu0 0.0
        %783 = vmatpush1.msra.mxu0 0.0
        %784 = vmatprep.subr.mxu0 0.0
        %785 = vmatpush1.msra.mxu0 0.0
        %786 = vmatprep.subr.mxu0 0.0
        %787 = vmatpush1.msra.mxu0 0.0
        %788 = vmatprep.subr.mxu0 0.0
        %789 = vmatpush1.msra.mxu0 0.0
        %790 = vmatprep.subr.mxu0 0.0
        %791 = vmatpush1.msra.mxu0 0.0
        %792 = vmatprep.subr.mxu0 0.0
        %793 = vmatpush1.msra.mxu0 0.0
        %794 = vmatprep.subr.mxu0 0.0
        %795 = vmatpush1.msra.mxu0 0.0
        %796 = vmatprep.subr.mxu0 0.0
        %797 = vmatpush1.msra.mxu0 0.0
        %798 = vmatprep.subr.mxu0 0.0
        %799 = vmatpush1.msra.mxu0 0.0
        %800 = vmatprep.subr.mxu0 0.0
        %801 = vmatpush1.msra.mxu0 0.0
        %802 = vmatprep.subr.mxu0 0.0
        %803 = vmatpush1.msra.mxu0 0.0
        %804 = vmatprep.subr.mxu0 0.0
        %805 = vmatpush1.msra.mxu0 0.0
        %806 = vmatprep.subr.mxu0 0.0
        %807 = vmatpush1.msra.mxu0 0.0
        %808 = vmatprep.subr.mxu0 0.0
        %809 = vmatpush1.msra.mxu0 0.0
        %810 = vmatprep.subr.mxu0 0.0
        %811 = vmatpush1.msra.mxu0 0.0
        %812 = vmatprep.subr.mxu0 0.0
        %813 = vmatpush1.msra.mxu0 0.0
        %814 = vmatprep.subr.mxu0 0.0
        %815 = vmatpush1.msra.mxu0 0.0
        %816 = vmatprep.subr.mxu0 0.0
        %817 = vmatpush1.msra.mxu0 0.0
        %818 = vmatprep.subr.mxu0 0.0
        %819 = vmatpush1.msra.mxu0 0.0
        %820 = vmatprep.subr.mxu0 0.0
        %821 = vmatpush1.msra.mxu0 0.0
        %822 = vmatprep.mubr.f32.mxu0 0.0
        %v823 = vand.u32 %v751, 4294901760
        %v824 = vsub.f32 %v751, %v823
        %v825 = vand.u32 %v824, 4294901760
        %v826 = vsub.f32 %v824, %v825
        %v827 = vand.u32 %v826, 4294901760
        %828 = vmatmul.mubr.f32.gmra.mrb[0].mxu0 %v827
        %v829 = vpop.f32.mrb[0].mxu0
        %v830 = vadd.f32 0.0, %v829
        %v831 = vpop.f32.mrb[0].mxu0
        %832 = vmatprep.mubr.f32.mxu0 0.0
        %v833 = vand.u32 %v754, 4294901760
        %v834 = vsub.f32 %v754, %v833
        %v835 = vand.u32 %v834, 4294901760
        %v836 = vsub.f32 %v834, %v835
        %v837 = vand.u32 %v836, 4294901760
        %838 = vmatmul.mubr.f32.gmra.mrb[0].mxu0 %v837
        %v839 = vpop.f32.mrb[0].mxu0
        %v840 = vadd.f32 0.0, %v839
        %v841 = vpop.f32.mrb[0].mxu0
        %842 = vdwg.mxu0
        %843 = vmatprep.subr.mxu0 0.0
        %v844 = vand.u32 %v207, 4294901760
        %v845 = vsub.f32 %v207, %v844
        %v846 = vand.u32 %v845, 4294901760
        %v847 = vsub.f32 %v845, %v846
        %v848 = vand.u32 %v847, 4294901760
        %849 = vmatpush1.msra.mxu0 %v848
        %850 = vmatprep.subr.mxu0 0.0
        %v851 = vand.u32 %v208, 4294901760
        %v852 = vsub.f32 %v208, %v851
        %v853 = vand.u32 %v852, 4294901760
        %v854 = vsub.f32 %v852, %v853
        %v855 = vand.u32 %v854, 4294901760
        %856 = vmatpush1.msra.mxu0 %v855
        %857 = vmatprep.subr.mxu0 0.0
        %858 = vmatpush1.msra.mxu0 0.0
        %859 = vmatprep.subr.mxu0 0.0
        %860 = vmatpush1.msra.mxu0 0.0
        %861 = vmatprep.subr.mxu0 0.0
        %862 = vmatpush1.msra.mxu0 0.0
        %863 = vmatprep.subr.mxu0 0.0
        %864 = vmatpush1.msra.mxu0 0.0
        %865 = vmatprep.subr.mxu0 0.0
        %866 = vmatpush1.msra.mxu0 0.0
        %867 = vmatprep.subr.mxu0 0.0
        %868 = vmatpush1.msra.mxu0 0.0
        %869 = vmatprep.subr.mxu0 0.0
        %870 = vmatpush1.msra.mxu0 0.0
        %871 = vmatprep.subr.mxu0 0.0
        %872 = vmatpush1.msra.mxu0 0.0
        %873 = vmatprep.subr.mxu0 0.0
        %874 = vmatpush1.msra.mxu0 0.0
        %875 = vmatprep.subr.mxu0 0.0
        %876 = vmatpush1.msra.mxu0 0.0
        %877 = vmatprep.subr.mxu0 0.0
        %878 = vmatpush1.msra.mxu0 0.0
        %879 = vmatprep.subr.mxu0 0.0
        %880 = vmatpush1.msra.mxu0 0.0
        %881 = vmatprep.subr.mxu0 0.0
        %882 = vmatpush1.msra.mxu0 0.0
        %883 = vmatprep.subr.mxu0 0.0
        %884 = vmatpush1.msra.mxu0 0.0
        %885 = vmatprep.subr.mxu0 0.0
        %886 = vmatpush1.msra.mxu0 0.0
        %887 = vmatprep.subr.mxu0 0.0
        %888 = vmatpush1.msra.mxu0 0.0
        %889 = vmatprep.subr.mxu0 0.0
        %890 = vmatpush1.msra.mxu0 0.0
        %891 = vmatprep.subr.mxu0 0.0
        %892 = vmatpush1.msra.mxu0 0.0
        %893 = vmatprep.subr.mxu0 0.0
        %894 = vmatpush1.msra.mxu0 0.0
        %895 = vmatprep.subr.mxu0 0.0
        %896 = vmatpush1.msra.mxu0 0.0
        %897 = vmatprep.subr.mxu0 0.0
        %898 = vmatpush1.msra.mxu0 0.0
        %899 = vmatprep.subr.mxu0 0.0
        %900 = vmatpush1.msra.mxu0 0.0
        %901 = vmatprep.subr.mxu0 0.0
        %902 = vmatpush1.msra.mxu0 0.0
        %903 = vmatprep.subr.mxu0 0.0
        %904 = vmatpush1.msra.mxu0 0.0
        %905 = vmatprep.subr.mxu0 0.0
        %906 = vmatpush1.msra.mxu0 0.0
        %907 = vmatprep.subr.mxu0 0.0
        %908 = vmatpush1.msra.mxu0 0.0
        %909 = vmatprep.subr.mxu0 0.0
        %910 = vmatpush1.msra.mxu0 0.0
        %911 = vmatprep.subr.mxu0 0.0
        %912 = vmatpush1.msra.mxu0 0.0
        %913 = vmatprep.subr.mxu0 0.0
        %914 = vmatpush1.msra.mxu0 0.0
        %915 = vmatprep.subr.mxu0 0.0
        %916 = vmatpush1.msra.mxu0 0.0
        %917 = vmatprep.mubr.f32.mxu0 0.0
        %v918 = vand.u32 %v751, 4294901760
        %919 = vmatmul.mubr.f32.gmra.mrb[0].mxu0 %v918
        %v920 = vpop.f32.mrb[0].mxu0
        %v921 = vadd.f32 %v830, %v920
        %v922 = vpop.f32.mrb[0].mxu0
        %923 = vmatprep.mubr.f32.mxu0 0.0
        %v924 = vand.u32 %v754, 4294901760
        %925 = vmatmul.mubr.f32.gmra.mrb[0].mxu0 %v924
        %v926 = vpop.f32.mrb[0].mxu0
        %v927 = vadd.f32 %v840, %v926
        %v928 = vpop.f32.mrb[0].mxu0
        %929 = vdwg.mxu0
        %930 = vmatprep.subr.mxu0 0.0
        %v931 = vand.u32 %v207, 4294901760
        %v932 = vsub.f32 %v207, %v931
        %933 = vmatpush1.msra.mxu0 %v932
        %934 = vmatprep.subr.mxu0 0.0
        %v935 = vand.u32 %v208, 4294901760
        %v936 = vsub.f32 %v208, %v935
        %937 = vmatpush1.msra.mxu0 %v936
        %938 = vmatprep.subr.mxu0 0.0
        %939 = vmatpush1.msra.mxu0 0.0
        %940 = vmatprep.subr.mxu0 0.0
        %941 = vmatpush1.msra.mxu0 0.0
        %942 = vmatprep.subr.mxu0 0.0
        %943 = vmatpush1.msra.mxu0 0.0
        %944 = vmatprep.subr.mxu0 0.0
        %945 = vmatpush1.msra.mxu0 0.0
        %946 = vmatprep.subr.mxu0 0.0
        %947 = vmatpush1.msra.mxu0 0.0
        %948 = vmatprep.subr.mxu0 0.0
        %949 = vmatpush1.msra.mxu0 0.0
        %950 = vmatprep.subr.mxu0 0.0
        %951 = vmatpush1.msra.mxu0 0.0
        %952 = vmatprep.subr.mxu0 0.0
        %953 = vmatpush1.msra.mxu0 0.0
        %954 = vmatprep.subr.mxu0 0.0
        %955 = vmatpush1.msra.mxu0 0.0
        %956 = vmatprep.subr.mxu0 0.0
        %957 = vmatpush1.msra.mxu0 0.0
        %958 = vmatprep.subr.mxu0 0.0
        %959 = vmatpush1.msra.mxu0 0.0
        %960 = vmatprep.subr.mxu0 0.0
        %961 = vmatpush1.msra.mxu0 0.0
        %962 = vmatprep.subr.mxu0 0.0
        %963 = vmatpush1.msra.mxu0 0.0
        %964 = vmatprep.subr.mxu0 0.0
        %965 = vmatpush1.msra.mxu0 0.0
        %966 = vmatprep.subr.mxu0 0.0
        %967 = vmatpush1.msra.mxu0 0.0
        %968 = vmatprep.subr.mxu0 0.0
        %969 = vmatpush1.msra.mxu0 0.0
        %970 = vmatprep.subr.mxu0 0.0
        %971 = vmatpush1.msra.mxu0 0.0
        %972 = vmatprep.subr.mxu0 0.0
        %973 = vmatpush1.msra.mxu0 0.0
        %974 = vmatprep.subr.mxu0 0.0
        %975 = vmatpush1.msra.mxu0 0.0
        %976 = vmatprep.subr.mxu0 0.0
        %977 = vmatpush1.msra.mxu0 0.0
        %978 = vmatprep.subr.mxu0 0.0
        %979 = vmatpush1.msra.mxu0 0.0
        %980 = vmatprep.subr.mxu0 0.0
        %981 = vmatpush1.msra.mxu0 0.0
        %982 = vmatprep.subr.mxu0 0.0
        %983 = vmatpush1.msra.mxu0 0.0
        %984 = vmatprep.subr.mxu0 0.0
        %985 = vmatpush1.msra.mxu0 0.0
        %986 = vmatprep.subr.mxu0 0.0
        %987 = vmatpush1.msra.mxu0 0.0
        %988 = vmatprep.subr.mxu0 0.0
        %989 = vmatpush1.msra.mxu0 0.0
        %990 = vmatprep.subr.mxu0 0.0
        %991 = vmatpush1.msra.mxu0 0.0
        %992 = vmatprep.subr.mxu0 0.0
        %993 = vmatpush1.msra.mxu0 0.0
        %994 = vmatprep.subr.mxu0 0.0
        %995 = vmatpush1.msra.mxu0 0.0
        %996 = vmatprep.subr.mxu0 0.0
        %997 = vmatpush1.msra.mxu0 0.0
        %998 = vmatprep.mubr.f32.mxu0 0.0
        %v999 = vand.u32 %v751, 4294901760
        %v1000 = vsub.f32 %v751, %v999
        %1001 = vmatmul.mubr.f32.gmra.mrb[0].mxu0 %v1000
        %v1002 = vpop.f32.mrb[0].mxu0
        %v1003 = vadd.f32 %v921, %v1002
        %v1004 = vpop.f32.mrb[0].mxu0
        %1005 = vmatprep.mubr.f32.mxu0 0.0
        %v1006 = vand.u32 %v754, 4294901760
        %v1007 = vsub.f32 %v754, %v1006
        %1008 = vmatmul.mubr.f32.gmra.mrb[0].mxu0 %v1007
        %v1009 = vpop.f32.mrb[0].mxu0
        %v1010 = vadd.f32 %v927, %v1009
        %v1011 = vpop.f32.mrb[0].mxu0
        %1012 = vdwg.mxu0
        %1013 = vmatprep.subr.mxu0 0.0
        %v1014 = vand.u32 %v207, 4294901760
        %1015 = vmatpush1.msra.mxu0 %v1014
        %1016 = vmatprep.subr.mxu0 0.0
        %v1017 = vand.u32 %v208, 4294901760
        %1018 = vmatpush1.msra.mxu0 %v1017
        %1019 = vmatprep.subr.mxu0 0.0
        %1020 = vmatpush1.msra.mxu0 0.0
        %1021 = vmatprep.subr.mxu0 0.0
        %1022 = vmatpush1.msra.mxu0 0.0
        %1023 = vmatprep.subr.mxu0 0.0
        %1024 = vmatpush1.msra.mxu0 0.0
        %1025 = vmatprep.subr.mxu0 0.0
        %1026 = vmatpush1.msra.mxu0 0.0
        %1027 = vmatprep.subr.mxu0 0.0
        %1028 = vmatpush1.msra.mxu0 0.0
        %1029 = vmatprep.subr.mxu0 0.0
        %1030 = vmatpush1.msra.mxu0 0.0
        %1031 = vmatprep.subr.mxu0 0.0
        %1032 = vmatpush1.msra.mxu0 0.0
        %1033 = vmatprep.subr.mxu0 0.0
        %1034 = vmatpush1.msra.mxu0 0.0
        %1035 = vmatprep.subr.mxu0 0.0
        %1036 = vmatpush1.msra.mxu0 0.0
        %1037 = vmatprep.subr.mxu0 0.0
        %1038 = vmatpush1.msra.mxu0 0.0
        %1039 = vmatprep.subr.mxu0 0.0
        %1040 = vmatpush1.msra.mxu0 0.0
        %1041 = vmatprep.subr.mxu0 0.0
        %1042 = vmatpush1.msra.mxu0 0.0
        %1043 = vmatprep.subr.mxu0 0.0
        %1044 = vmatpush1.msra.mxu0 0.0
        %1045 = vmatprep.subr.mxu0 0.0
        %1046 = vmatpush1.msra.mxu0 0.0
        %1047 = vmatprep.subr.mxu0 0.0
        %1048 = vmatpush1.msra.mxu0 0.0
        %1049 = vmatprep.subr.mxu0 0.0
        %1050 = vmatpush1.msra.mxu0 0.0
        %1051 = vmatprep.subr.mxu0 0.0
        %1052 = vmatpush1.msra.mxu0 0.0
        %1053 = vmatprep.subr.mxu0 0.0
        %1054 = vmatpush1.msra.mxu0 0.0
        %1055 = vmatprep.subr.mxu0 0.0
        %1056 = vmatpush1.msra.mxu0 0.0
        %1057 = vmatprep.subr.mxu0 0.0
        %1058 = vmatpush1.msra.mxu0 0.0
        %1059 = vmatprep.subr.mxu0 0.0
        %1060 = vmatpush1.msra.mxu0 0.0
        %1061 = vmatprep.subr.mxu0 0.0
        %1062 = vmatpush1.msra.mxu0 0.0
        %1063 = vmatprep.subr.mxu0 0.0
        %1064 = vmatpush1.msra.mxu0 0.0
        %1065 = vmatprep.subr.mxu0 0.0
        %1066 = vmatpush1.msra.mxu0 0.0
        %1067 = vmatprep.subr.mxu0 0.0
        %1068 = vmatpush1.msra.mxu0 0.0
        %1069 = vmatprep.subr.mxu0 0.0
        %1070 = vmatpush1.msra.mxu0 0.0
        %1071 = vmatprep.subr.mxu0 0.0
        %1072 = vmatpush1.msra.mxu0 0.0
        %1073 = vmatprep.subr.mxu0 0.0
        %1074 = vmatpush1.msra.mxu0 0.0
        %1075 = vmatprep.subr.mxu0 0.0
        %1076 = vmatpush1.msra.mxu0 0.0
        %1077 = vmatprep.subr.mxu0 0.0
        %1078 = vmatpush1.msra.mxu0 0.0
        %1079 = vmatprep.mubr.f32.mxu0 0.0
        %v1080 = vand.u32 %v751, 4294901760
        %v1081 = vsub.f32 %v751, %v1080
        %v1082 = vand.u32 %v1081, 4294901760
        %1083 = vmatmul.mubr.f32.gmra.mrb[0].mxu0 %v1082
        %v1084 = vpop.f32.mrb[0].mxu0
        %v1085 = vadd.f32 %v1003, %v1084
        %v1086 = vpop.f32.mrb[0].mxu0
        %1087 = vmatprep.mubr.f32.mxu0 0.0
        %v1088 = vand.u32 %v754, 4294901760
        %v1089 = vsub.f32 %v754, %v1088
        %v1090 = vand.u32 %v1089, 4294901760
        %1091 = vmatmul.mubr.f32.gmra.mrb[0].mxu0 %v1090
        %v1092 = vpop.f32.mrb[0].mxu0
        %v1093 = vadd.f32 %v1010, %v1092
        %v1094 = vpop.f32.mrb[0].mxu0
        %1095 = vdwg.mxu0
        %1096 = vmatprep.subr.mxu0 0.0
        %v1097 = vand.u32 %v207, 4294901760
        %v1098 = vsub.f32 %v207, %v1097
        %v1099 = vand.u32 %v1098, 4294901760
        %1100 = vmatpush1.msra.mxu0 %v1099
        %1101 = vmatprep.subr.mxu0 0.0
        %v1102 = vand.u32 %v208, 4294901760
        %v1103 = vsub.f32 %v208, %v1102
        %v1104 = vand.u32 %v1103, 4294901760
        %1105 = vmatpush1.msra.mxu0 %v1104
        %1106 = vmatprep.subr.mxu0 0.0
        %1107 = vmatpush1.msra.mxu0 0.0
        %1108 = vmatprep.subr.mxu0 0.0
        %1109 = vmatpush1.msra.mxu0 0.0
        %1110 = vmatprep.subr.mxu0 0.0
        %1111 = vmatpush1.msra.mxu0 0.0
        %1112 = vmatprep.subr.mxu0 0.0
        %1113 = vmatpush1.msra.mxu0 0.0
        %1114 = vmatprep.subr.mxu0 0.0
        %1115 = vmatpush1.msra.mxu0 0.0
        %1116 = vmatprep.subr.mxu0 0.0
        %1117 = vmatpush1.msra.mxu0 0.0
        %1118 = vmatprep.subr.mxu0 0.0
        %1119 = vmatpush1.msra.mxu0 0.0
        %1120 = vmatprep.subr.mxu0 0.0
        %1121 = vmatpush1.msra.mxu0 0.0
        %1122 = vmatprep.subr.mxu0 0.0
        %1123 = vmatpush1.msra.mxu0 0.0
        %1124 = vmatprep.subr.mxu0 0.0
        %1125 = vmatpush1.msra.mxu0 0.0
        %1126 = vmatprep.subr.mxu0 0.0
        %1127 = vmatpush1.msra.mxu0 0.0
        %1128 = vmatprep.subr.mxu0 0.0
        %1129 = vmatpush1.msra.mxu0 0.0
        %1130 = vmatprep.subr.mxu0 0.0
        %1131 = vmatpush1.msra.mxu0 0.0
        %1132 = vmatprep.subr.mxu0 0.0
        %1133 = vmatpush1.msra.mxu0 0.0
        %1134 = vmatprep.subr.mxu0 0.0
        %1135 = vmatpush1.msra.mxu0 0.0
        %1136 = vmatprep.subr.mxu0 0.0
        %1137 = vmatpush1.msra.mxu0 0.0
        %1138 = vmatprep.subr.mxu0 0.0
        %1139 = vmatpush1.msra.mxu0 0.0
        %1140 = vmatprep.subr.mxu0 0.0
        %1141 = vmatpush1.msra.mxu0 0.0
        %1142 = vmatprep.subr.mxu0 0.0
        %1143 = vmatpush1.msra.mxu0 0.0
        %1144 = vmatprep.subr.mxu0 0.0
        %1145 = vmatpush1.msra.mxu0 0.0
        %1146 = vmatprep.subr.mxu0 0.0
        %1147 = vmatpush1.msra.mxu0 0.0
        %1148 = vmatprep.subr.mxu0 0.0
        %1149 = vmatpush1.msra.mxu0 0.0
        %1150 = vmatprep.subr.mxu0 0.0
        %1151 = vmatpush1.msra.mxu0 0.0
        %1152 = vmatprep.subr.mxu0 0.0
        %1153 = vmatpush1.msra.mxu0 0.0
        %1154 = vmatprep.subr.mxu0 0.0
        %1155 = vmatpush1.msra.mxu0 0.0
        %1156 = vmatprep.subr.mxu0 0.0
        %1157 = vmatpush1.msra.mxu0 0.0
        %1158 = vmatprep.subr.mxu0 0.0
        %1159 = vmatpush1.msra.mxu0 0.0
        %1160 = vmatprep.subr.mxu0 0.0
        %1161 = vmatpush1.msra.mxu0 0.0
        %1162 = vmatprep.subr.mxu0 0.0
        %1163 = vmatpush1.msra.mxu0 0.0
        %1164 = vmatprep.subr.mxu0 0.0
        %1165 = vmatpush1.msra.mxu0 0.0
        %1166 = vmatprep.mubr.f32.mxu0 0.0
        %v1167 = vand.u32 %v751, 4294901760
        %1168 = vmatmul.mubr.f32.gmra.mrb[0].mxu0 %v1167
        %v1169 = vpop.f32.mrb[0].mxu0
        %v1170 = vadd.f32 %v1085, %v1169
        %v1171 = vpop.f32.mrb[0].mxu0
        %1172 = vmatprep.mubr.f32.mxu0 0.0
        %v1173 = vand.u32 %v754, 4294901760
        %1174 = vmatmul.mubr.f32.gmra.mrb[0].mxu0 %v1173
        %v1175 = vpop.f32.mrb[0].mxu0
        %v1176 = vadd.f32 %v1093, %v1175
        %v1177 = vpop.f32.mrb[0].mxu0
        %1178 = vdwg.mxu0
        %1179 = vmatprep.subr.mxu0 0.0
        %v1180 = vand.u32 %v207, 4294901760
        %1181 = vmatpush1.msra.mxu0 %v1180
        %1182 = vmatprep.subr.mxu0 0.0
        %v1183 = vand.u32 %v208, 4294901760
        %1184 = vmatpush1.msra.mxu0 %v1183
        %1185 = vmatprep.subr.mxu0 0.0
        %1186 = vmatpush1.msra.mxu0 0.0
        %1187 = vmatprep.subr.mxu0 0.0
        %1188 = vmatpush1.msra.mxu0 0.0
        %1189 = vmatprep.subr.mxu0 0.0
        %1190 = vmatpush1.msra.mxu0 0.0
        %1191 = vmatprep.subr.mxu0 0.0
        %1192 = vmatpush1.msra.mxu0 0.0
        %1193 = vmatprep.subr.mxu0 0.0
        %1194 = vmatpush1.msra.mxu0 0.0
        %1195 = vmatprep.subr.mxu0 0.0
        %1196 = vmatpush1.msra.mxu0 0.0
        %1197 = vmatprep.subr.mxu0 0.0
        %1198 = vmatpush1.msra.mxu0 0.0
        %1199 = vmatprep.subr.mxu0 0.0
        %1200 = vmatpush1.msra.mxu0 0.0
        %1201 = vmatprep.subr.mxu0 0.0
        %1202 = vmatpush1.msra.mxu0 0.0
        %1203 = vmatprep.subr.mxu0 0.0
        %1204 = vmatpush1.msra.mxu0 0.0
        %1205 = vmatprep.subr.mxu0 0.0
        %1206 = vmatpush1.msra.mxu0 0.0
        %1207 = vmatprep.subr.mxu0 0.0
        %1208 = vmatpush1.msra.mxu0 0.0
        %1209 = vmatprep.subr.mxu0 0.0
        %1210 = vmatpush1.msra.mxu0 0.0
        %1211 = vmatprep.subr.mxu0 0.0
        %1212 = vmatpush1.msra.mxu0 0.0
        %1213 = vmatprep.subr.mxu0 0.0
        %1214 = vmatpush1.msra.mxu0 0.0
        %1215 = vmatprep.subr.mxu0 0.0
        %1216 = vmatpush1.msra.mxu0 0.0
        %1217 = vmatprep.subr.mxu0 0.0
        %1218 = vmatpush1.msra.mxu0 0.0
        %1219 = vmatprep.subr.mxu0 0.0
        %1220 = vmatpush1.msra.mxu0 0.0
        %1221 = vmatprep.subr.mxu0 0.0
        %1222 = vmatpush1.msra.mxu0 0.0
        %1223 = vmatprep.subr.mxu0 0.0
        %1224 = vmatpush1.msra.mxu0 0.0
        %1225 = vmatprep.subr.mxu0 0.0
        %1226 = vmatpush1.msra.mxu0 0.0
        %1227 = vmatprep.subr.mxu0 0.0
        %1228 = vmatpush1.msra.mxu0 0.0
        %1229 = vmatprep.subr.mxu0 0.0
        %1230 = vmatpush1.msra.mxu0 0.0
        %1231 = vmatprep.subr.mxu0 0.0
        %1232 = vmatpush1.msra.mxu0 0.0
        %1233 = vmatprep.subr.mxu0 0.0
        %1234 = vmatpush1.msra.mxu0 0.0
        %1235 = vmatprep.subr.mxu0 0.0
        %1236 = vmatpush1.msra.mxu0 0.0
        %1237 = vmatprep.subr.mxu0 0.0
        %1238 = vmatpush1.msra.mxu0 0.0
        %1239 = vmatprep.subr.mxu0 0.0
        %1240 = vmatpush1.msra.mxu0 0.0
        %1241 = vmatprep.subr.mxu0 0.0
        %1242 = vmatpush1.msra.mxu0 0.0
        %1243 = vmatprep.subr.mxu0 0.0
        %1244 = vmatpush1.msra.mxu0 0.0
        %1245 = vmatprep.mubr.f32.mxu0 0.0
        %v1246 = vand.u32 %v751, 4294901760
        %1247 = vmatmul.mubr.f32.gmra.mrb[0].mxu0 %v1246
        %v1248 = vpop.f32.mrb[0].mxu0
        %v1249 = vadd.f32 %v1170, %v1248
        %v1250 = vpop.f32.mrb[0].mxu0
        %1251 = vmatprep.mubr.f32.mxu0 0.0
        %v1252 = vand.u32 %v754, 4294901760
        %1253 = vmatmul.mubr.f32.gmra.mrb[0].mxu0 %v1252
        %v1254 = vpop.f32.mrb[0].mxu0
        %v1255 = vadd.f32 %v1176, %v1254
        %v1256 = vpop.f32.mrb[0].mxu0
        %1257 = vdwg.mxu0
        %v1259 = vsel %vm217, %v209, 0
        %v1262 = vsel %vm217, %v210, 0
        %1264 = vmatprep.subr.mxu0 0.0
        %v1265 = vand.u32 %v209, 4294901760
        %1266 = vmatpush1.msra.mxu0 %v1265
        %1267 = vmatprep.subr.mxu0 0.0
        %v1268 = vand.u32 %v210, 4294901760
        %1269 = vmatpush1.msra.mxu0 %v1268
        %1270 = vmatprep.subr.mxu0 0.0
        %1271 = vmatpush1.msra.mxu0 0.0
        %1272 = vmatprep.subr.mxu0 0.0
        %1273 = vmatpush1.msra.mxu0 0.0
        %1274 = vmatprep.subr.mxu0 0.0
        %1275 = vmatpush1.msra.mxu0 0.0
        %1276 = vmatprep.subr.mxu0 0.0
        %1277 = vmatpush1.msra.mxu0 0.0
        %1278 = vmatprep.subr.mxu0 0.0
        %1279 = vmatpush1.msra.mxu0 0.0
        %1280 = vmatprep.subr.mxu0 0.0
        %1281 = vmatpush1.msra.mxu0 0.0
        %1282 = vmatprep.subr.mxu0 0.0
        %1283 = vmatpush1.msra.mxu0 0.0
        %1284 = vmatprep.subr.mxu0 0.0
        %1285 = vmatpush1.msra.mxu0 0.0
        %1286 = vmatprep.subr.mxu0 0.0
        %1287 = vmatpush1.msra.mxu0 0.0
        %1288 = vmatprep.subr.mxu0 0.0
        %1289 = vmatpush1.msra.mxu0 0.0
        %1290 = vmatprep.subr.mxu0 0.0
        %1291 = vmatpush1.msra.mxu0 0.0
        %1292 = vmatprep.subr.mxu0 0.0
        %1293 = vmatpush1.msra.mxu0 0.0
        %1294 = vmatprep.subr.mxu0 0.0
        %1295 = vmatpush1.msra.mxu0 0.0
        %1296 = vmatprep.subr.mxu0 0.0
        %1297 = vmatpush1.msra.mxu0 0.0
        %1298 = vmatprep.subr.mxu0 0.0
        %1299 = vmatpush1.msra.mxu0 0.0
        %1300 = vmatprep.subr.mxu0 0.0
        %1301 = vmatpush1.msra.mxu0 0.0
        %1302 = vmatprep.subr.mxu0 0.0
        %1303 = vmatpush1.msra.mxu0 0.0
        %1304 = vmatprep.subr.mxu0 0.0
        %1305 = vmatpush1.msra.mxu0 0.0
        %1306 = vmatprep.subr.mxu0 0.0
        %1307 = vmatpush1.msra.mxu0 0.0
        %1308 = vmatprep.subr.mxu0 0.0
        %1309 = vmatpush1.msra.mxu0 0.0
        %1310 = vmatprep.subr.mxu0 0.0
        %1311 = vmatpush1.msra.mxu0 0.0
        %1312 = vmatprep.subr.mxu0 0.0
        %1313 = vmatpush1.msra.mxu0 0.0
        %1314 = vmatprep.subr.mxu0 0.0
        %1315 = vmatpush1.msra.mxu0 0.0
        %1316 = vmatprep.subr.mxu0 0.0
        %1317 = vmatpush1.msra.mxu0 0.0
        %1318 = vmatprep.subr.mxu0 0.0
        %1319 = vmatpush1.msra.mxu0 0.0
        %1320 = vmatprep.subr.mxu0 0.0
        %1321 = vmatpush1.msra.mxu0 0.0
        %1322 = vmatprep.subr.mxu0 0.0
        %1323 = vmatpush1.msra.mxu0 0.0
        %1324 = vmatprep.subr.mxu0 0.0
        %1325 = vmatpush1.msra.mxu0 0.0
        %1326 = vmatprep.subr.mxu0 0.0
        %1327 = vmatpush1.msra.mxu0 0.0
        %1328 = vmatprep.subr.mxu0 0.0
        %1329 = vmatpush1.msra.mxu0 0.0
        %1330 = vmatprep.mubr.f32.mxu0 0.0
        %v1331 = vand.u32 %v1259, 4294901760
        %v1332 = vsub.f32 %v1259, %v1331
        %v1333 = vand.u32 %v1332, 4294901760
        %v1334 = vsub.f32 %v1332, %v1333
        %v1335 = vand.u32 %v1334, 4294901760
        %1336 = vmatmul.mubr.f32.gmra.mrb[0].mxu0 %v1335
        %v1337 = vpop.f32.mrb[0].mxu0
        %v1338 = vadd.f32 0.0, %v1337
        %v1339 = vpop.f32.mrb[0].mxu0
        %1340 = vmatprep.mubr.f32.mxu0 0.0
        %v1341 = vand.u32 %v1262, 4294901760
        %v1342 = vsub.f32 %v1262, %v1341
        %v1343 = vand.u32 %v1342, 4294901760
        %v1344 = vsub.f32 %v1342, %v1343
        %v1345 = vand.u32 %v1344, 4294901760
        %1346 = vmatmul.mubr.f32.gmra.mrb[0].mxu0 %v1345
        %v1347 = vpop.f32.mrb[0].mxu0
        %v1348 = vadd.f32 0.0, %v1347
        %v1349 = vpop.f32.mrb[0].mxu0
        %1350 = vdwg.mxu0
        %1351 = vmatprep.subr.mxu0 0.0
        %v1352 = vand.u32 %v209, 4294901760
        %v1353 = vsub.f32 %v209, %v1352
        %v1354 = vand.u32 %v1353, 4294901760
        %v1355 = vsub.f32 %v1353, %v1354
        %v1356 = vand.u32 %v1355, 4294901760
        %1357 = vmatpush1.msra.mxu0 %v1356
        %1358 = vmatprep.subr.mxu0 0.0
        %v1359 = vand.u32 %v210, 4294901760
        %v1360 = vsub.f32 %v210, %v1359
        %v1361 = vand.u32 %v1360, 4294901760
        %v1362 = vsub.f32 %v1360, %v1361
        %v1363 = vand.u32 %v1362, 4294901760
        %1364 = vmatpush1.msra.mxu0 %v1363
        %1365 = vmatprep.subr.mxu0 0.0
        %1366 = vmatpush1.msra.mxu0 0.0
        %1367 = vmatprep.subr.mxu0 0.0
        %1368 = vmatpush1.msra.mxu0 0.0
        %1369 = vmatprep.subr.mxu0 0.0
        %1370 = vmatpush1.msra.mxu0 0.0
        %1371 = vmatprep.subr.mxu0 0.0
        %1372 = vmatpush1.msra.mxu0 0.0
        %1373 = vmatprep.subr.mxu0 0.0
        %1374 = vmatpush1.msra.mxu0 0.0
        %1375 = vmatprep.subr.mxu0 0.0
        %1376 = vmatpush1.msra.mxu0 0.0
        %1377 = vmatprep.subr.mxu0 0.0
        %1378 = vmatpush1.msra.mxu0 0.0
        %1379 = vmatprep.subr.mxu0 0.0
        %1380 = vmatpush1.msra.mxu0 0.0
        %1381 = vmatprep.subr.mxu0 0.0
        %1382 = vmatpush1.msra.mxu0 0.0
        %1383 = vmatprep.subr.mxu0 0.0
        %1384 = vmatpush1.msra.mxu0 0.0
        %1385 = vmatprep.subr.mxu0 0.0
        %1386 = vmatpush1.msra.mxu0 0.0
        %1387 = vmatprep.subr.mxu0 0.0
        %1388 = vmatpush1.msra.mxu0 0.0
        %1389 = vmatprep.subr.mxu0 0.0
        %1390 = vmatpush1.msra.mxu0 0.0
        %1391 = vmatprep.subr.mxu0 0.0
        %1392 = vmatpush1.msra.mxu0 0.0
        %1393 = vmatprep.subr.mxu0 0.0
        %1394 = vmatpush1.msra.mxu0 0.0
        %1395 = vmatprep.subr.mxu0 0.0
        %1396 = vmatpush1.msra.mxu0 0.0
        %1397 = vmatprep.subr.mxu0 0.0
        %1398 = vmatpush1.msra.mxu0 0.0
        %1399 = vmatprep.subr.mxu0 0.0
        %1400 = vmatpush1.msra.mxu0 0.0
        %1401 = vmatprep.subr.mxu0 0.0
        %1402 = vmatpush1.msra.mxu0 0.0
        %1403 = vmatprep.subr.mxu0 0.0
        %1404 = vmatpush1.msra.mxu0 0.0
        %1405 = vmatprep.subr.mxu0 0.0
        %1406 = vmatpush1.msra.mxu0 0.0
        %1407 = vmatprep.subr.mxu0 0.0
        %1408 = vmatpush1.msra.mxu0 0.0
        %1409 = vmatprep.subr.mxu0 0.0
        %1410 = vmatpush1.msra.mxu0 0.0
        %1411 = vmatprep.subr.mxu0 0.0
        %1412 = vmatpush1.msra.mxu0 0.0
        %1413 = vmatprep.subr.mxu0 0.0
        %1414 = vmatpush1.msra.mxu0 0.0
        %1415 = vmatprep.subr.mxu0 0.0
        %1416 = vmatpush1.msra.mxu0 0.0
        %1417 = vmatprep.subr.mxu0 0.0
        %1418 = vmatpush1.msra.mxu0 0.0
        %1419 = vmatprep.subr.mxu0 0.0
        %1420 = vmatpush1.msra.mxu0 0.0
        %1421 = vmatprep.subr.mxu0 0.0
        %1422 = vmatpush1.msra.mxu0 0.0
        %1423 = vmatprep.subr.mxu0 0.0
        %1424 = vmatpush1.msra.mxu0 0.0
        %1425 = vmatprep.mubr.f32.mxu0 0.0
        %v1426 = vand.u32 %v1259, 4294901760
        %1427 = vmatmul.mubr.f32.gmra.mrb[0].mxu0 %v1426
        %v1428 = vpop.f32.mrb[0].mxu0
        %v1429 = vadd.f32 %v1338, %v1428
        %v1430 = vpop.f32.mrb[0].mxu0
        %1431 = vmatprep.mubr.f32.mxu0 0.0
        %v1432 = vand.u32 %v1262, 4294901760
        %1433 = vmatmul.mubr.f32.gmra.mrb[0].mxu0 %v1432
        %v1434 = vpop.f32.mrb[0].mxu0
        %v1435 = vadd.f32 %v1348, %v1434
        %v1436 = vpop.f32.mrb[0].mxu0
        %1437 = vdwg.mxu0
        %1438 = vmatprep.subr.mxu0 0.0
        %v1439 = vand.u32 %v209, 4294901760
        %v1440 = vsub.f32 %v209, %v1439
        %1441 = vmatpush1.msra.mxu0 %v1440
        %1442 = vmatprep.subr.mxu0 0.0
        %v1443 = vand.u32 %v210, 4294901760
        %v1444 = vsub.f32 %v210, %v1443
        %1445 = vmatpush1.msra.mxu0 %v1444
        %1446 = vmatprep.subr.mxu0 0.0
        %1447 = vmatpush1.msra.mxu0 0.0
        %1448 = vmatprep.subr.mxu0 0.0
        %1449 = vmatpush1.msra.mxu0 0.0
        %1450 = vmatprep.subr.mxu0 0.0
        %1451 = vmatpush1.msra.mxu0 0.0
        %1452 = vmatprep.subr.mxu0 0.0
        %1453 = vmatpush1.msra.mxu0 0.0
        %1454 = vmatprep.subr.mxu0 0.0
        %1455 = vmatpush1.msra.mxu0 0.0
        %1456 = vmatprep.subr.mxu0 0.0
        %1457 = vmatpush1.msra.mxu0 0.0
        %1458 = vmatprep.subr.mxu0 0.0
        %1459 = vmatpush1.msra.mxu0 0.0
        %1460 = vmatprep.subr.mxu0 0.0
        %1461 = vmatpush1.msra.mxu0 0.0
        %1462 = vmatprep.subr.mxu0 0.0
        %1463 = vmatpush1.msra.mxu0 0.0
        %1464 = vmatprep.subr.mxu0 0.0
        %1465 = vmatpush1.msra.mxu0 0.0
        %1466 = vmatprep.subr.mxu0 0.0
        %1467 = vmatpush1.msra.mxu0 0.0
        %1468 = vmatprep.subr.mxu0 0.0
        %1469 = vmatpush1.msra.mxu0 0.0
        %1470 = vmatprep.subr.mxu0 0.0
        %1471 = vmatpush1.msra.mxu0 0.0
        %1472 = vmatprep.subr.mxu0 0.0
        %1473 = vmatpush1.msra.mxu0 0.0
        %1474 = vmatprep.subr.mxu0 0.0
        %1475 = vmatpush1.msra.mxu0 0.0
        %1476 = vmatprep.subr.mxu0 0.0
        %1477 = vmatpush1.msra.mxu0 0.0
        %1478 = vmatprep.subr.mxu0 0.0
        %1479 = vmatpush1.msra.mxu0 0.0
        %1480 = vmatprep.subr.mxu0 0.0
        %1481 = vmatpush1.msra.mxu0 0.0
        %1482 = vmatprep.subr.mxu0 0.0
        %1483 = vmatpush1.msra.mxu0 0.0
        %1484 = vmatprep.subr.mxu0 0.0
        %1485 = vmatpush1.msra.mxu0 0.0
        %1486 = vmatprep.subr.mxu0 0.0
        %1487 = vmatpush1.msra.mxu0 0.0
        %1488 = vmatprep.subr.mxu0 0.0
        %1489 = vmatpush1.msra.mxu0 0.0
        %1490 = vmatprep.subr.mxu0 0.0
        %1491 = vmatpush1.msra.mxu0 0.0
        %1492 = vmatprep.subr.mxu0 0.0
        %1493 = vmatpush1.msra.mxu0 0.0
        %1494 = vmatprep.subr.mxu0 0.0
        %1495 = vmatpush1.msra.mxu0 0.0
        %1496 = vmatprep.subr.mxu0 0.0
        %1497 = vmatpush1.msra.mxu0 0.0
        %1498 = vmatprep.subr.mxu0 0.0
        %1499 = vmatpush1.msra.mxu0 0.0
        %1500 = vmatprep.subr.mxu0 0.0
        %1501 = vmatpush1.msra.mxu0 0.0
        %1502 = vmatprep.subr.mxu0 0.0
        %1503 = vmatpush1.msra.mxu0 0.0
        %1504 = vmatprep.subr.mxu0 0.0
        %1505 = vmatpush1.msra.mxu0 0.0
        %1506 = vmatprep.mubr.f32.mxu0 0.0
        %v1507 = vand.u32 %v1259, 4294901760
        %v1508 = vsub.f32 %v1259, %v1507
        %1509 = vmatmul.mubr.f32.gmra.mrb[0].mxu0 %v1508
        %v1510 = vpop.f32.mrb[0].mxu0
        %v1511 = vadd.f32 %v1429, %v1510
        %v1512 = vpop.f32.mrb[0].mxu0
        %1513 = vmatprep.mubr.f32.mxu0 0.0
        %v1514 = vand.u32 %v1262, 4294901760
        %v1515 = vsub.f32 %v1262, %v1514
        %1516 = vmatmul.mubr.f32.gmra.mrb[0].mxu0 %v1515
        %v1517 = vpop.f32.mrb[0].mxu0
        %v1518 = vadd.f32 %v1435, %v1517
        %v1519 = vpop.f32.mrb[0].mxu0
        %1520 = vdwg.mxu0
        %1521 = vmatprep.subr.mxu0 0.0
        %v1522 = vand.u32 %v209, 4294901760
        %1523 = vmatpush1.msra.mxu0 %v1522
        %1524 = vmatprep.subr.mxu0 0.0
        %v1525 = vand.u32 %v210, 4294901760
        %1526 = vmatpush1.msra.mxu0 %v1525
        %1527 = vmatprep.subr.mxu0 0.0
        %1528 = vmatpush1.msra.mxu0 0.0
        %1529 = vmatprep.subr.mxu0 0.0
        %1530 = vmatpush1.msra.mxu0 0.0
        %1531 = vmatprep.subr.mxu0 0.0
        %1532 = vmatpush1.msra.mxu0 0.0
        %1533 = vmatprep.subr.mxu0 0.0
        %1534 = vmatpush1.msra.mxu0 0.0
        %1535 = vmatprep.subr.mxu0 0.0
        %1536 = vmatpush1.msra.mxu0 0.0
        %1537 = vmatprep.subr.mxu0 0.0
        %1538 = vmatpush1.msra.mxu0 0.0
        %1539 = vmatprep.subr.mxu0 0.0
        %1540 = vmatpush1.msra.mxu0 0.0
        %1541 = vmatprep.subr.mxu0 0.0
        %1542 = vmatpush1.msra.mxu0 0.0
        %1543 = vmatprep.subr.mxu0 0.0
        %1544 = vmatpush1.msra.mxu0 0.0
        %1545 = vmatprep.subr.mxu0 0.0
        %1546 = vmatpush1.msra.mxu0 0.0
        %1547 = vmatprep.subr.mxu0 0.0
        %1548 = vmatpush1.msra.mxu0 0.0
        %1549 = vmatprep.subr.mxu0 0.0
        %1550 = vmatpush1.msra.mxu0 0.0
        %1551 = vmatprep.subr.mxu0 0.0
        %1552 = vmatpush1.msra.mxu0 0.0
        %1553 = vmatprep.subr.mxu0 0.0
        %1554 = vmatpush1.msra.mxu0 0.0
        %1555 = vmatprep.subr.mxu0 0.0
        %1556 = vmatpush1.msra.mxu0 0.0
        %1557 = vmatprep.subr.mxu0 0.0
        %1558 = vmatpush1.msra.mxu0 0.0
        %1559 = vmatprep.subr.mxu0 0.0
        %1560 = vmatpush1.msra.mxu0 0.0
        %1561 = vmatprep.subr.mxu0 0.0
        %1562 = vmatpush1.msra.mxu0 0.0
        %1563 = vmatprep.subr.mxu0 0.0
        %1564 = vmatpush1.msra.mxu0 0.0
        %1565 = vmatprep.subr.mxu0 0.0
        %1566 = vmatpush1.msra.mxu0 0.0
        %1567 = vmatprep.subr.mxu0 0.0
        %1568 = vmatpush1.msra.mxu0 0.0
        %1569 = vmatprep.subr.mxu0 0.0
        %1570 = vmatpush1.msra.mxu0 0.0
        %1571 = vmatprep.subr.mxu0 0.0
        %1572 = vmatpush1.msra.mxu0 0.0
        %1573 = vmatprep.subr.mxu0 0.0
        %1574 = vmatpush1.msra.mxu0 0.0
        %1575 = vmatprep.subr.mxu0 0.0
        %1576 = vmatpush1.msra.mxu0 0.0
        %1577 = vmatprep.subr.mxu0 0.0
        %1578 = vmatpush1.msra.mxu0 0.0
        %1579 = vmatprep.subr.mxu0 0.0
        %1580 = vmatpush1.msra.mxu0 0.0
        %1581 = vmatprep.subr.mxu0 0.0
        %1582 = vmatpush1.msra.mxu0 0.0
        %1583 = vmatprep.subr.mxu0 0.0
        %1584 = vmatpush1.msra.mxu0 0.0
        %1585 = vmatprep.subr.mxu0 0.0
        %1586 = vmatpush1.msra.mxu0 0.0
        %1587 = vmatprep.mubr.f32.mxu0 0.0
        %v1588 = vand.u32 %v1259, 4294901760
        %v1589 = vsub.f32 %v1259, %v1588
        %v1590 = vand.u32 %v1589, 4294901760
        %1591 = vmatmul.mubr.f32.gmra.mrb[0].mxu0 %v1590
        %v1592 = vpop.f32.mrb[0].mxu0
        %v1593 = vadd.f32 %v1511, %v1592
        %v1594 = vpop.f32.mrb[0].mxu0
        %1595 = vmatprep.mubr.f32.mxu0 0.0
        %v1596 = vand.u32 %v1262, 4294901760
        %v1597 = vsub.f32 %v1262, %v1596
        %v1598 = vand.u32 %v1597, 4294901760
        %1599 = vmatmul.mubr.f32.gmra.mrb[0].mxu0 %v1598
        %v1600 = vpop.f32.mrb[0].mxu0
        %v1601 = vadd.f32 %v1518, %v1600
        %v1602 = vpop.f32.mrb[0].mxu0
        %1603 = vdwg.mxu0
        %1604 = vmatprep.subr.mxu0 0.0
        %v1605 = vand.u32 %v209, 4294901760
        %v1606 = vsub.f32 %v209, %v1605
        %v1607 = vand.u32 %v1606, 4294901760
        %1608 = vmatpush1.msra.mxu0 %v1607
        %1609 = vmatprep.subr.mxu0 0.0
        %v1610 = vand.u32 %v210, 4294901760
        %v1611 = vsub.f32 %v210, %v1610
        %v1612 = vand.u32 %v1611, 4294901760
        %1613 = vmatpush1.msra.mxu0 %v1612
        %1614 = vmatprep.subr.mxu0 0.0
        %1615 = vmatpush1.msra.mxu0 0.0
        %1616 = vmatprep.subr.mxu0 0.0
        %1617 = vmatpush1.msra.mxu0 0.0
        %1618 = vmatprep.subr.mxu0 0.0
        %1619 = vmatpush1.msra.mxu0 0.0
        %1620 = vmatprep.subr.mxu0 0.0
        %1621 = vmatpush1.msra.mxu0 0.0
        %1622 = vmatprep.subr.mxu0 0.0
        %1623 = vmatpush1.msra.mxu0 0.0
        %1624 = vmatprep.subr.mxu0 0.0
        %1625 = vmatpush1.msra.mxu0 0.0
        %1626 = vmatprep.subr.mxu0 0.0
        %1627 = vmatpush1.msra.mxu0 0.0
        %1628 = vmatprep.subr.mxu0 0.0
        %1629 = vmatpush1.msra.mxu0 0.0
        %1630 = vmatprep.subr.mxu0 0.0
        %1631 = vmatpush1.msra.mxu0 0.0
        %1632 = vmatprep.subr.mxu0 0.0
        %1633 = vmatpush1.msra.mxu0 0.0
        %1634 = vmatprep.subr.mxu0 0.0
        %1635 = vmatpush1.msra.mxu0 0.0
        %1636 = vmatprep.subr.mxu0 0.0
        %1637 = vmatpush1.msra.mxu0 0.0
        %1638 = vmatprep.subr.mxu0 0.0
        %1639 = vmatpush1.msra.mxu0 0.0
        %1640 = vmatprep.subr.mxu0 0.0
        %1641 = vmatpush1.msra.mxu0 0.0
        %1642 = vmatprep.subr.mxu0 0.0
        %1643 = vmatpush1.msra.mxu0 0.0
        %1644 = vmatprep.subr.mxu0 0.0
        %1645 = vmatpush1.msra.mxu0 0.0
        %1646 = vmatprep.subr.mxu0 0.0
        %1647 = vmatpush1.msra.mxu0 0.0
        %1648 = vmatprep.subr.mxu0 0.0
        %1649 = vmatpush1.msra.mxu0 0.0
        %1650 = vmatprep.subr.mxu0 0.0
        %1651 = vmatpush1.msra.mxu0 0.0
        %1652 = vmatprep.subr.mxu0 0.0
        %1653 = vmatpush1.msra.mxu0 0.0
        %1654 = vmatprep.subr.mxu0 0.0
        %1655 = vmatpush1.msra.mxu0 0.0
        %1656 = vmatprep.subr.mxu0 0.0
        %1657 = vmatpush1.msra.mxu0 0.0
        %1658 = vmatprep.subr.mxu0 0.0
        %1659 = vmatpush1.msra.mxu0 0.0
        %1660 = vmatprep.subr.mxu0 0.0
        %1661 = vmatpush1.msra.mxu0 0.0
        %1662 = vmatprep.subr.mxu0 0.0
        %1663 = vmatpush1.msra.mxu0 0.0
        %1664 = vmatprep.subr.mxu0 0.0
        %1665 = vmatpush1.msra.mxu0 0.0
        %1666 = vmatprep.subr.mxu0 0.0
        %1667 = vmatpush1.msra.mxu0 0.0
        %1668 = vmatprep.subr.mxu0 0.0
        %1669 = vmatpush1.msra.mxu0 0.0
        %1670 = vmatprep.subr.mxu0 0.0
        %1671 = vmatpush1.msra.mxu0 0.0
        %1672 = vmatprep.subr.mxu0 0.0
        %1673 = vmatpush1.msra.mxu0 0.0
        %1674 = vmatprep.mubr.f32.mxu0 0.0
        %v1675 = vand.u32 %v1259, 4294901760
        %1676 = vmatmul.mubr.f32.gmra.mrb[0].mxu0 %v1675
        %v1677 = vpop.f32.mrb[0].mxu0
        %v1678 = vadd.f32 %v1593, %v1677
        %v1679 = vpop.f32.mrb[0].mxu0
        %1680 = vmatprep.mubr.f32.mxu0 0.0
        %v1681 = vand.u32 %v1262, 4294901760
        %1682 = vmatmul.mubr.f32.gmra.mrb[0].mxu0 %v1681
        %v1683 = vpop.f32.mrb[0].mxu0
        %v1684 = vadd.f32 %v1601, %v1683
        %v1685 = vpop.f32.mrb[0].mxu0
        %1686 = vdwg.mxu0
        %1687 = vmatprep.subr.mxu0 0.0
        %v1688 = vand.u32 %v209, 4294901760
        %1689 = vmatpush1.msra.mxu0 %v1688
        %1690 = vmatprep.subr.mxu0 0.0
        %v1691 = vand.u32 %v210, 4294901760
        %1692 = vmatpush1.msra.mxu0 %v1691
        %1693 = vmatprep.subr.mxu0 0.0
        %1694 = vmatpush1.msra.mxu0 0.0
        %1695 = vmatprep.subr.mxu0 0.0
        %1696 = vmatpush1.msra.mxu0 0.0
        %1697 = vmatprep.subr.mxu0 0.0
        %1698 = vmatpush1.msra.mxu0 0.0
        %1699 = vmatprep.subr.mxu0 0.0
        %1700 = vmatpush1.msra.mxu0 0.0
        %1701 = vmatprep.subr.mxu0 0.0
        %1702 = vmatpush1.msra.mxu0 0.0
        %1703 = vmatprep.subr.mxu0 0.0
        %1704 = vmatpush1.msra.mxu0 0.0
        %1705 = vmatprep.subr.mxu0 0.0
        %1706 = vmatpush1.msra.mxu0 0.0
        %1707 = vmatprep.subr.mxu0 0.0
        %1708 = vmatpush1.msra.mxu0 0.0
        %1709 = vmatprep.subr.mxu0 0.0
        %1710 = vmatpush1.msra.mxu0 0.0
        %1711 = vmatprep.subr.mxu0 0.0
        %1712 = vmatpush1.msra.mxu0 0.0
        %1713 = vmatprep.subr.mxu0 0.0
        %1714 = vmatpush1.msra.mxu0 0.0
        %1715 = vmatprep.subr.mxu0 0.0
        %1716 = vmatpush1.msra.mxu0 0.0
        %1717 = vmatprep.subr.mxu0 0.0
        %1718 = vmatpush1.msra.mxu0 0.0
        %1719 = vmatprep.subr.mxu0 0.0
        %1720 = vmatpush1.msra.mxu0 0.0
        %1721 = vmatprep.subr.mxu0 0.0
        %1722 = vmatpush1.msra.mxu0 0.0
        %1723 = vmatprep.subr.mxu0 0.0
        %1724 = vmatpush1.msra.mxu0 0.0
        %1725 = vmatprep.subr.mxu0 0.0
        %1726 = vmatpush1.msra.mxu0 0.0
        %1727 = vmatprep.subr.mxu0 0.0
        %1728 = vmatpush1.msra.mxu0 0.0
        %1729 = vmatprep.subr.mxu0 0.0
        %1730 = vmatpush1.msra.mxu0 0.0
        %1731 = vmatprep.subr.mxu0 0.0
        %1732 = vmatpush1.msra.mxu0 0.0
        %1733 = vmatprep.subr.mxu0 0.0
        %1734 = vmatpush1.msra.mxu0 0.0
        %1735 = vmatprep.subr.mxu0 0.0
        %1736 = vmatpush1.msra.mxu0 0.0
        %1737 = vmatprep.subr.mxu0 0.0
        %1738 = vmatpush1.msra.mxu0 0.0
        %1739 = vmatprep.subr.mxu0 0.0
        %1740 = vmatpush1.msra.mxu0 0.0
        %1741 = vmatprep.subr.mxu0 0.0
        %1742 = vmatpush1.msra.mxu0 0.0
        %1743 = vmatprep.subr.mxu0 0.0
        %1744 = vmatpush1.msra.mxu0 0.0
        %1745 = vmatprep.subr.mxu0 0.0
        %1746 = vmatpush1.msra.mxu0 0.0
        %1747 = vmatprep.subr.mxu0 0.0
        %1748 = vmatpush1.msra.mxu0 0.0
        %1749 = vmatprep.subr.mxu0 0.0
        %1750 = vmatpush1.msra.mxu0 0.0
        %1751 = vmatprep.subr.mxu0 0.0
        %1752 = vmatpush1.msra.mxu0 0.0
        %1753 = vmatprep.mubr.f32.mxu0 0.0
        %v1754 = vand.u32 %v1259, 4294901760
        %1755 = vmatmul.mubr.f32.gmra.mrb[0].mxu0 %v1754
        %v1756 = vpop.f32.mrb[0].mxu0
        %v1757 = vadd.f32 %v1678, %v1756
        %v1758 = vpop.f32.mrb[0].mxu0
        %1759 = vmatprep.mubr.f32.mxu0 0.0
        %v1760 = vand.u32 %v1262, 4294901760
        %1761 = vmatmul.mubr.f32.gmra.mrb[0].mxu0 %v1760
        %v1762 = vpop.f32.mrb[0].mxu0
        %v1763 = vadd.f32 %v1684, %v1762
        %v1764 = vpop.f32.mrb[0].mxu0
        %1765 = vdwg.mxu0
        %v1767 = vsel %vm217, %v211, 0
        %v1770 = vsel %vm217, %v212, 0
        %1772 = vmatprep.subr.mxu0 0.0
        %v1773 = vand.u32 %v211, 4294901760
        %1774 = vmatpush1.msra.mxu0 %v1773
        %1775 = vmatprep.subr.mxu0 0.0
        %v1776 = vand.u32 %v212, 4294901760
        %1777 = vmatpush1.msra.mxu0 %v1776
        %1778 = vmatprep.subr.mxu0 0.0
        %1779 = vmatpush1.msra.mxu0 0.0
        %1780 = vmatprep.subr.mxu0 0.0
        %1781 = vmatpush1.msra.mxu0 0.0
        %1782 = vmatprep.subr.mxu0 0.0
        %1783 = vmatpush1.msra.mxu0 0.0
        %1784 = vmatprep.subr.mxu0 0.0
        %1785 = vmatpush1.msra.mxu0 0.0
        %1786 = vmatprep.subr.mxu0 0.0
        %1787 = vmatpush1.msra.mxu0 0.0
        %1788 = vmatprep.subr.mxu0 0.0
        %1789 = vmatpush1.msra.mxu0 0.0
        %1790 = vmatprep.subr.mxu0 0.0
        %1791 = vmatpush1.msra.mxu0 0.0
        %1792 = vmatprep.subr.mxu0 0.0
        %1793 = vmatpush1.msra.mxu0 0.0
        %1794 = vmatprep.subr.mxu0 0.0
        %1795 = vmatpush1.msra.mxu0 0.0
        %1796 = vmatprep.subr.mxu0 0.0
        %1797 = vmatpush1.msra.mxu0 0.0
        %1798 = vmatprep.subr.mxu0 0.0
        %1799 = vmatpush1.msra.mxu0 0.0
        %1800 = vmatprep.subr.mxu0 0.0
        %1801 = vmatpush1.msra.mxu0 0.0
        %1802 = vmatprep.subr.mxu0 0.0
        %1803 = vmatpush1.msra.mxu0 0.0
        %1804 = vmatprep.subr.mxu0 0.0
        %1805 = vmatpush1.msra.mxu0 0.0
        %1806 = vmatprep.subr.mxu0 0.0
        %1807 = vmatpush1.msra.mxu0 0.0
        %1808 = vmatprep.subr.mxu0 0.0
        %1809 = vmatpush1.msra.mxu0 0.0
        %1810 = vmatprep.subr.mxu0 0.0
        %1811 = vmatpush1.msra.mxu0 0.0
        %1812 = vmatprep.subr.mxu0 0.0
        %1813 = vmatpush1.msra.mxu0 0.0
        %1814 = vmatprep.subr.mxu0 0.0
        %1815 = vmatpush1.msra.mxu0 0.0
        %1816 = vmatprep.subr.mxu0 0.0
        %1817 = vmatpush1.msra.mxu0 0.0
        %1818 = vmatprep.subr.mxu0 0.0
        %1819 = vmatpush1.msra.mxu0 0.0
        %1820 = vmatprep.subr.mxu0 0.0
        %1821 = vmatpush1.msra.mxu0 0.0
        %1822 = vmatprep.subr.mxu0 0.0
        %1823 = vmatpush1.msra.mxu0 0.0
        %1824 = vmatprep.subr.mxu0 0.0
        %1825 = vmatpush1.msra.mxu0 0.0
        %1826 = vmatprep.subr.mxu0 0.0
        %1827 = vmatpush1.msra.mxu0 0.0
        %1828 = vmatprep.subr.mxu0 0.0
        %1829 = vmatpush1.msra.mxu0 0.0
        %1830 = vmatprep.subr.mxu0 0.0
        %1831 = vmatpush1.msra.mxu0 0.0
        %1832 = vmatprep.subr.mxu0 0.0
        %1833 = vmatpush1.msra.mxu0 0.0
        %1834 = vmatprep.subr.mxu0 0.0
        %1835 = vmatpush1.msra.mxu0 0.0
        %1836 = vmatprep.subr.mxu0 0.0
        %1837 = vmatpush1.msra.mxu0 0.0
        %1838 = vmatprep.mubr.f32.mxu0 0.0
        %v1839 = vand.u32 %v1767, 4294901760
        %v1840 = vsub.f32 %v1767, %v1839
        %v1841 = vand.u32 %v1840, 4294901760
        %v1842 = vsub.f32 %v1840, %v1841
        %v1843 = vand.u32 %v1842, 4294901760
        %1844 = vmatmul.mubr.f32.gmra.mrb[0].mxu0 %v1843
        %v1845 = vpop.f32.mrb[0].mxu0
        %v1846 = vadd.f32 0.0, %v1845
        %v1847 = vpop.f32.mrb[0].mxu0
        %1848 = vmatprep.mubr.f32.mxu0 0.0
        %v1849 = vand.u32 %v1770, 4294901760
        %v1850 = vsub.f32 %v1770, %v1849
        %v1851 = vand.u32 %v1850, 4294901760
        %v1852 = vsub.f32 %v1850, %v1851
        %v1853 = vand.u32 %v1852, 4294901760
        %1854 = vmatmul.mubr.f32.gmra.mrb[0].mxu0 %v1853
        %v1855 = vpop.f32.mrb[0].mxu0
        %v1856 = vadd.f32 0.0, %v1855
        %v1857 = vpop.f32.mrb[0].mxu0
        %1858 = vdwg.mxu0
        %1859 = vmatprep.subr.mxu0 0.0
        %v1860 = vand.u32 %v211, 4294901760
        %v1861 = vsub.f32 %v211, %v1860
        %v1862 = vand.u32 %v1861, 4294901760
        %v1863 = vsub.f32 %v1861, %v1862
        %v1864 = vand.u32 %v1863, 4294901760
        %1865 = vmatpush1.msra.mxu0 %v1864
        %1866 = vmatprep.subr.mxu0 0.0
        %v1867 = vand.u32 %v212, 4294901760
        %v1868 = vsub.f32 %v212, %v1867
        %v1869 = vand.u32 %v1868, 4294901760
        %v1870 = vsub.f32 %v1868, %v1869
        %v1871 = vand.u32 %v1870, 4294901760
        %1872 = vmatpush1.msra.mxu0 %v1871
        %1873 = vmatprep.subr.mxu0 0.0
        %1874 = vmatpush1.msra.mxu0 0.0
        %1875 = vmatprep.subr.mxu0 0.0
        %1876 = vmatpush1.msra.mxu0 0.0
        %1877 = vmatprep.subr.mxu0 0.0
        %1878 = vmatpush1.msra.mxu0 0.0
        %1879 = vmatprep.subr.mxu0 0.0
        %1880 = vmatpush1.msra.mxu0 0.0
        %1881 = vmatprep.subr.mxu0 0.0
        %1882 = vmatpush1.msra.mxu0 0.0
        %1883 = vmatprep.subr.mxu0 0.0
        %1884 = vmatpush1.msra.mxu0 0.0
        %1885 = vmatprep.subr.mxu0 0.0
        %1886 = vmatpush1.msra.mxu0 0.0
        %1887 = vmatprep.subr.mxu0 0.0
        %1888 = vmatpush1.msra.mxu0 0.0
        %1889 = vmatprep.subr.mxu0 0.0
        %1890 = vmatpush1.msra.mxu0 0.0
        %1891 = vmatprep.subr.mxu0 0.0
        %1892 = vmatpush1.msra.mxu0 0.0
        %1893 = vmatprep.subr.mxu0 0.0
        %1894 = vmatpush1.msra.mxu0 0.0
        %1895 = vmatprep.subr.mxu0 0.0
        %1896 = vmatpush1.msra.mxu0 0.0
        %1897 = vmatprep.subr.mxu0 0.0
        %1898 = vmatpush1.msra.mxu0 0.0
        %1899 = vmatprep.subr.mxu0 0.0
        %1900 = vmatpush1.msra.mxu0 0.0
        %1901 = vmatprep.subr.mxu0 0.0
        %1902 = vmatpush1.msra.mxu0 0.0
        %1903 = vmatprep.subr.mxu0 0.0
        %1904 = vmatpush1.msra.mxu0 0.0
        %1905 = vmatprep.subr.mxu0 0.0
        %1906 = vmatpush1.msra.mxu0 0.0
        %1907 = vmatprep.subr.mxu0 0.0
        %1908 = vmatpush1.msra.mxu0 0.0
        %1909 = vmatprep.subr.mxu0 0.0
        %1910 = vmatpush1.msra.mxu0 0.0
        %1911 = vmatprep.subr.mxu0 0.0
        %1912 = vmatpush1.msra.mxu0 0.0
        %1913 = vmatprep.subr.mxu0 0.0
        %1914 = vmatpush1.msra.mxu0 0.0
        %1915 = vmatprep.subr.mxu0 0.0
        %1916 = vmatpush1.msra.mxu0 0.0
        %1917 = vmatprep.subr.mxu0 0.0
        %1918 = vmatpush1.msra.mxu0 0.0
        %1919 = vmatprep.subr.mxu0 0.0
        %1920 = vmatpush1.msra.mxu0 0.0
        %1921 = vmatprep.subr.mxu0 0.0
        %1922 = vmatpush1.msra.mxu0 0.0
        %1923 = vmatprep.subr.mxu0 0.0
        %1924 = vmatpush1.msra.mxu0 0.0
        %1925 = vmatprep.subr.mxu0 0.0
        %1926 = vmatpush1.msra.mxu0 0.0
        %1927 = vmatprep.subr.mxu0 0.0
        %1928 = vmatpush1.msra.mxu0 0.0
        %1929 = vmatprep.subr.mxu0 0.0
        %1930 = vmatpush1.msra.mxu0 0.0
        %1931 = vmatprep.subr.mxu0 0.0
        %1932 = vmatpush1.msra.mxu0 0.0
        %1933 = vmatprep.mubr.f32.mxu0 0.0
        %v1934 = vand.u32 %v1767, 4294901760
        %1935 = vmatmul.mubr.f32.gmra.mrb[0].mxu0 %v1934
        %v1936 = vpop.f32.mrb[0].mxu0
        %v1937 = vadd.f32 %v1846, %v1936
        %v1938 = vpop.f32.mrb[0].mxu0
        %1939 = vmatprep.mubr.f32.mxu0 0.0
        %v1940 = vand.u32 %v1770, 4294901760
        %1941 = vmatmul.mubr.f32.gmra.mrb[0].mxu0 %v1940
        %v1942 = vpop.f32.mrb[0].mxu0
        %v1943 = vadd.f32 %v1856, %v1942
        %v1944 = vpop.f32.mrb[0].mxu0
        %1945 = vdwg.mxu0
        %1946 = vmatprep.subr.mxu0 0.0
        %v1947 = vand.u32 %v211, 4294901760
        %v1948 = vsub.f32 %v211, %v1947
        %1949 = vmatpush1.msra.mxu0 %v1948
        %1950 = vmatprep.subr.mxu0 0.0
        %v1951 = vand.u32 %v212, 4294901760
        %v1952 = vsub.f32 %v212, %v1951
        %1953 = vmatpush1.msra.mxu0 %v1952
        %1954 = vmatprep.subr.mxu0 0.0
        %1955 = vmatpush1.msra.mxu0 0.0
        %1956 = vmatprep.subr.mxu0 0.0
        %1957 = vmatpush1.msra.mxu0 0.0
        %1958 = vmatprep.subr.mxu0 0.0
        %1959 = vmatpush1.msra.mxu0 0.0
        %1960 = vmatprep.subr.mxu0 0.0
        %1961 = vmatpush1.msra.mxu0 0.0
        %1962 = vmatprep.subr.mxu0 0.0
        %1963 = vmatpush1.msra.mxu0 0.0
        %1964 = vmatprep.subr.mxu0 0.0
        %1965 = vmatpush1.msra.mxu0 0.0
        %1966 = vmatprep.subr.mxu0 0.0
        %1967 = vmatpush1.msra.mxu0 0.0
        %1968 = vmatprep.subr.mxu0 0.0
        %1969 = vmatpush1.msra.mxu0 0.0
        %1970 = vmatprep.subr.mxu0 0.0
        %1971 = vmatpush1.msra.mxu0 0.0
        %1972 = vmatprep.subr.mxu0 0.0
        %1973 = vmatpush1.msra.mxu0 0.0
        %1974 = vmatprep.subr.mxu0 0.0
        %1975 = vmatpush1.msra.mxu0 0.0
        %1976 = vmatprep.subr.mxu0 0.0
        %1977 = vmatpush1.msra.mxu0 0.0
        %1978 = vmatprep.subr.mxu0 0.0
        %1979 = vmatpush1.msra.mxu0 0.0
        %1980 = vmatprep.subr.mxu0 0.0
        %1981 = vmatpush1.msra.mxu0 0.0
        %1982 = vmatprep.subr.mxu0 0.0
        %1983 = vmatpush1.msra.mxu0 0.0
        %1984 = vmatprep.subr.mxu0 0.0
        %1985 = vmatpush1.msra.mxu0 0.0
        %1986 = vmatprep.subr.mxu0 0.0
        %1987 = vmatpush1.msra.mxu0 0.0
        %1988 = vmatprep.subr.mxu0 0.0
        %1989 = vmatpush1.msra.mxu0 0.0
        %1990 = vmatprep.subr.mxu0 0.0
        %1991 = vmatpush1.msra.mxu0 0.0
        %1992 = vmatprep.subr.mxu0 0.0
        %1993 = vmatpush1.msra.mxu0 0.0
        %1994 = vmatprep.subr.mxu0 0.0
        %1995 = vmatpush1.msra.mxu0 0.0
        %1996 = vmatprep.subr.mxu0 0.0
        %1997 = vmatpush1.msra.mxu0 0.0
        %1998 = vmatprep.subr.mxu0 0.0
        %1999 = vmatpush1.msra.mxu0 0.0
        %2000 = vmatprep.subr.mxu0 0.0
        %2001 = vmatpush1.msra.mxu0 0.0
        %2002 = vmatprep.subr.mxu0 0.0
        %2003 = vmatpush1.msra.mxu0 0.0
        %2004 = vmatprep.subr.mxu0 0.0
        %2005 = vmatpush1.msra.mxu0 0.0
        %2006 = vmatprep.subr.mxu0 0.0
        %2007 = vmatpush1.msra.mxu0 0.0
        %2008 = vmatprep.subr.mxu0 0.0
        %2009 = vmatpush1.msra.mxu0 0.0
        %2010 = vmatprep.subr.mxu0 0.0
        %2011 = vmatpush1.msra.mxu0 0.0
        %2012 = vmatprep.subr.mxu0 0.0
        %2013 = vmatpush1.msra.mxu0 0.0
        %2014 = vmatprep.mubr.f32.mxu0 0.0
        %v2015 = vand.u32 %v1767, 4294901760
        %v2016 = vsub.f32 %v1767, %v2015
        %2017 = vmatmul.mubr.f32.gmra.mrb[0].mxu0 %v2016
        %v2018 = vpop.f32.mrb[0].mxu0
        %v2019 = vadd.f32 %v1937, %v2018
        %v2020 = vpop.f32.mrb[0].mxu0
        %2021 = vmatprep.mubr.f32.mxu0 0.0
        %v2022 = vand.u32 %v1770, 4294901760
        %v2023 = vsub.f32 %v1770, %v2022
        %2024 = vmatmul.mubr.f32.gmra.mrb[0].mxu0 %v2023
        %v2025 = vpop.f32.mrb[0].mxu0
        %v2026 = vadd.f32 %v1943, %v2025
        %v2027 = vpop.f32.mrb[0].mxu0
        %2028 = vdwg.mxu0
        %2029 = vmatprep.subr.mxu0 0.0
        %v2030 = vand.u32 %v211, 4294901760
        %2031 = vmatpush1.msra.mxu0 %v2030
        %2032 = vmatprep.subr.mxu0 0.0
        %v2033 = vand.u32 %v212, 4294901760
        %2034 = vmatpush1.msra.mxu0 %v2033
        %2035 = vmatprep.subr.mxu0 0.0
        %2036 = vmatpush1.msra.mxu0 0.0
        %2037 = vmatprep.subr.mxu0 0.0
        %2038 = vmatpush1.msra.mxu0 0.0
        %2039 = vmatprep.subr.mxu0 0.0
        %2040 = vmatpush1.msra.mxu0 0.0
        %2041 = vmatprep.subr.mxu0 0.0
        %2042 = vmatpush1.msra.mxu0 0.0
        %2043 = vmatprep.subr.mxu0 0.0
        %2044 = vmatpush1.msra.mxu0 0.0
        %2045 = vmatprep.subr.mxu0 0.0
        %2046 = vmatpush1.msra.mxu0 0.0
        %2047 = vmatprep.subr.mxu0 0.0
        %2048 = vmatpush1.msra.mxu0 0.0
        %2049 = vmatprep.subr.mxu0 0.0
        %2050 = vmatpush1.msra.mxu0 0.0
        %2051 = vmatprep.subr.mxu0 0.0
        %2052 = vmatpush1.msra.mxu0 0.0
        %2053 = vmatprep.subr.mxu0 0.0
        %2054 = vmatpush1.msra.mxu0 0.0
        %2055 = vmatprep.subr.mxu0 0.0
        %2056 = vmatpush1.msra.mxu0 0.0
        %2057 = vmatprep.subr.mxu0 0.0
        %2058 = vmatpush1.msra.mxu0 0.0
        %2059 = vmatprep.subr.mxu0 0.0
        %2060 = vmatpush1.msra.mxu0 0.0
        %2061 = vmatprep.subr.mxu0 0.0
        %2062 = vmatpush1.msra.mxu0 0.0
        %2063 = vmatprep.subr.mxu0 0.0
        %2064 = vmatpush1.msra.mxu0 0.0
        %2065 = vmatprep.subr.mxu0 0.0
        %2066 = vmatpush1.msra.mxu0 0.0
        %2067 = vmatprep.subr.mxu0 0.0
        %2068 = vmatpush1.msra.mxu0 0.0
        %2069 = vmatprep.subr.mxu0 0.0
        %2070 = vmatpush1.msra.mxu0 0.0
        %2071 = vmatprep.subr.mxu0 0.0
        %2072 = vmatpush1.msra.mxu0 0.0
        %2073 = vmatprep.subr.mxu0 0.0
        %2074 = vmatpush1.msra.mxu0 0.0
        %2075 = vmatprep.subr.mxu0 0.0
        %2076 = vmatpush1.msra.mxu0 0.0
        %2077 = vmatprep.subr.mxu0 0.0
        %2078 = vmatpush1.msra.mxu0 0.0
        %2079 = vmatprep.subr.mxu0 0.0
        %2080 = vmatpush1.msra.mxu0 0.0
        %2081 = vmatprep.subr.mxu0 0.0
        %2082 = vmatpush1.msra.mxu0 0.0
        %2083 = vmatprep.subr.mxu0 0.0
        %2084 = vmatpush1.msra.mxu0 0.0
        %2085 = vmatprep.subr.mxu0 0.0
        %2086 = vmatpush1.msra.mxu0 0.0
        %2087 = vmatprep.subr.mxu0 0.0
        %2088 = vmatpush1.msra.mxu0 0.0
        %2089 = vmatprep.subr.mxu0 0.0
        %2090 = vmatpush1.msra.mxu0 0.0
        %2091 = vmatprep.subr.mxu0 0.0
        %2092 = vmatpush1.msra.mxu0 0.0
        %2093 = vmatprep.subr.mxu0 0.0
        %2094 = vmatpush1.msra.mxu0 0.0
        %2095 = vmatprep.mubr.f32.mxu0 0.0
        %v2096 = vand.u32 %v1767, 4294901760
        %v2097 = vsub.f32 %v1767, %v2096
        %v2098 = vand.u32 %v2097, 4294901760
        %2099 = vmatmul.mubr.f32.gmra.mrb[0].mxu0 %v2098
        %v2100 = vpop.f32.mrb[0].mxu0
        %v2101 = vadd.f32 %v2019, %v2100
        %v2102 = vpop.f32.mrb[0].mxu0
        %2103 = vmatprep.mubr.f32.mxu0 0.0
        %v2104 = vand.u32 %v1770, 4294901760
        %v2105 = vsub.f32 %v1770, %v2104
        %v2106 = vand.u32 %v2105, 4294901760
        %2107 = vmatmul.mubr.f32.gmra.mrb[0].mxu0 %v2106
        %v2108 = vpop.f32.mrb[0].mxu0
        %v2109 = vadd.f32 %v2026, %v2108
        %v2110 = vpop.f32.mrb[0].mxu0
        %2111 = vdwg.mxu0
        %2112 = vmatprep.subr.mxu0 0.0
        %v2113 = vand.u32 %v211, 4294901760
        %v2114 = vsub.f32 %v211, %v2113
        %v2115 = vand.u32 %v2114, 4294901760
        %2116 = vmatpush1.msra.mxu0 %v2115
        %2117 = vmatprep.subr.mxu0 0.0
        %v2118 = vand.u32 %v212, 4294901760
        %v2119 = vsub.f32 %v212, %v2118
        %v2120 = vand.u32 %v2119, 4294901760
        %2121 = vmatpush1.msra.mxu0 %v2120
        %2122 = vmatprep.subr.mxu0 0.0
        %2123 = vmatpush1.msra.mxu0 0.0
        %2124 = vmatprep.subr.mxu0 0.0
        %2125 = vmatpush1.msra.mxu0 0.0
        %2126 = vmatprep.subr.mxu0 0.0
        %2127 = vmatpush1.msra.mxu0 0.0
        %2128 = vmatprep.subr.mxu0 0.0
        %2129 = vmatpush1.msra.mxu0 0.0
        %2130 = vmatprep.subr.mxu0 0.0
        %2131 = vmatpush1.msra.mxu0 0.0
        %2132 = vmatprep.subr.mxu0 0.0
        %2133 = vmatpush1.msra.mxu0 0.0
        %2134 = vmatprep.subr.mxu0 0.0
        %2135 = vmatpush1.msra.mxu0 0.0
        %2136 = vmatprep.subr.mxu0 0.0
        %2137 = vmatpush1.msra.mxu0 0.0
        %2138 = vmatprep.subr.mxu0 0.0
        %2139 = vmatpush1.msra.mxu0 0.0
        %2140 = vmatprep.subr.mxu0 0.0
        %2141 = vmatpush1.msra.mxu0 0.0
        %2142 = vmatprep.subr.mxu0 0.0
        %2143 = vmatpush1.msra.mxu0 0.0
        %2144 = vmatprep.subr.mxu0 0.0
        %2145 = vmatpush1.msra.mxu0 0.0
        %2146 = vmatprep.subr.mxu0 0.0
        %2147 = vmatpush1.msra.mxu0 0.0
        %2148 = vmatprep.subr.mxu0 0.0
        %2149 = vmatpush1.msra.mxu0 0.0
        %2150 = vmatprep.subr.mxu0 0.0
        %2151 = vmatpush1.msra.mxu0 0.0
        %2152 = vmatprep.subr.mxu0 0.0
        %2153 = vmatpush1.msra.mxu0 0.0
        %2154 = vmatprep.subr.mxu0 0.0
        %2155 = vmatpush1.msra.mxu0 0.0
        %2156 = vmatprep.subr.mxu0 0.0
        %2157 = vmatpush1.msra.mxu0 0.0
        %2158 = vmatprep.subr.mxu0 0.0
        %2159 = vmatpush1.msra.mxu0 0.0
        %2160 = vmatprep.subr.mxu0 0.0
        %2161 = vmatpush1.msra.mxu0 0.0
        %2162 = vmatprep.subr.mxu0 0.0
        %2163 = vmatpush1.msra.mxu0 0.0
        %2164 = vmatprep.subr.mxu0 0.0
        %2165 = vmatpush1.msra.mxu0 0.0
        %2166 = vmatprep.subr.mxu0 0.0
        %2167 = vmatpush1.msra.mxu0 0.0
        %2168 = vmatprep.subr.mxu0 0.0
        %2169 = vmatpush1.msra.mxu0 0.0
        %2170 = vmatprep.subr.mxu0 0.0
        %2171 = vmatpush1.msra.mxu0 0.0
        %2172 = vmatprep.subr.mxu0 0.0
        %2173 = vmatpush1.msra.mxu0 0.0
        %2174 = vmatprep.subr.mxu0 0.0
        %2175 = vmatpush1.msra.mxu0 0.0
        %2176 = vmatprep.subr.mxu0 0.0
        %2177 = vmatpush1.msra.mxu0 0.0
        %2178 = vmatprep.subr.mxu0 0.0
        %2179 = vmatpush1.msra.mxu0 0.0
        %2180 = vmatprep.subr.mxu0 0.0
        %2181 = vmatpush1.msra.mxu0 0.0
        %2182 = vmatprep.mubr.f32.mxu0 0.0
        %v2183 = vand.u32 %v1767, 4294901760
        %2184 = vmatmul.mubr.f32.gmra.mrb[0].mxu0 %v2183
        %v2185 = vpop.f32.mrb[0].mxu0
        %v2186 = vadd.f32 %v2101, %v2185
        %v2187 = vpop.f32.mrb[0].mxu0
        %2188 = vmatprep.mubr.f32.mxu0 0.0
        %v2189 = vand.u32 %v1770, 4294901760
        %2190 = vmatmul.mubr.f32.gmra.mrb[0].mxu0 %v2189
        %v2191 = vpop.f32.mrb[0].mxu0
        %v2192 = vadd.f32 %v2109, %v2191
        %v2193 = vpop.f32.mrb[0].mxu0
        %2194 = vdwg.mxu0
        %2195 = vmatprep.subr.mxu0 0.0
        %v2196 = vand.u32 %v211, 4294901760
        %2197 = vmatpush1.msra.mxu0 %v2196
        %2198 = vmatprep.subr.mxu0 0.0
        %v2199 = vand.u32 %v212, 4294901760
        %2200 = vmatpush1.msra.mxu0 %v2199
        %2201 = vmatprep.subr.mxu0 0.0
        %2202 = vmatpush1.msra.mxu0 0.0
        %2203 = vmatprep.subr.mxu0 0.0
        %2204 = vmatpush1.msra.mxu0 0.0
        %2205 = vmatprep.subr.mxu0 0.0
        %2206 = vmatpush1.msra.mxu0 0.0
        %2207 = vmatprep.subr.mxu0 0.0
        %2208 = vmatpush1.msra.mxu0 0.0
        %2209 = vmatprep.subr.mxu0 0.0
        %2210 = vmatpush1.msra.mxu0 0.0
        %2211 = vmatprep.subr.mxu0 0.0
        %2212 = vmatpush1.msra.mxu0 0.0
        %2213 = vmatprep.subr.mxu0 0.0
        %2214 = vmatpush1.msra.mxu0 0.0
        %2215 = vmatprep.subr.mxu0 0.0
        %2216 = vmatpush1.msra.mxu0 0.0
        %2217 = vmatprep.subr.mxu0 0.0
        %2218 = vmatpush1.msra.mxu0 0.0
        %2219 = vmatprep.subr.mxu0 0.0
        %2220 = vmatpush1.msra.mxu0 0.0
        %2221 = vmatprep.subr.mxu0 0.0
        %2222 = vmatpush1.msra.mxu0 0.0
        %2223 = vmatprep.subr.mxu0 0.0
        %2224 = vmatpush1.msra.mxu0 0.0
        %2225 = vmatprep.subr.mxu0 0.0
        %2226 = vmatpush1.msra.mxu0 0.0
        %2227 = vmatprep.subr.mxu0 0.0
        %2228 = vmatpush1.msra.mxu0 0.0
        %2229 = vmatprep.subr.mxu0 0.0
        %2230 = vmatpush1.msra.mxu0 0.0
        %2231 = vmatprep.subr.mxu0 0.0
        %2232 = vmatpush1.msra.mxu0 0.0
        %2233 = vmatprep.subr.mxu0 0.0
        %2234 = vmatpush1.msra.mxu0 0.0
        %2235 = vmatprep.subr.mxu0 0.0
        %2236 = vmatpush1.msra.mxu0 0.0
        %2237 = vmatprep.subr.mxu0 0.0
        %2238 = vmatpush1.msra.mxu0 0.0
        %2239 = vmatprep.subr.mxu0 0.0
        %2240 = vmatpush1.msra.mxu0 0.0
        %2241 = vmatprep.subr.mxu0 0.0
        %2242 = vmatpush1.msra.mxu0 0.0
        %2243 = vmatprep.subr.mxu0 0.0
        %2244 = vmatpush1.msra.mxu0 0.0
        %2245 = vmatprep.subr.mxu0 0.0
        %2246 = vmatpush1.msra.mxu0 0.0
        %2247 = vmatprep.subr.mxu0 0.0
        %2248 = vmatpush1.msra.mxu0 0.0
        %2249 = vmatprep.subr.mxu0 0.0
        %2250 = vmatpush1.msra.mxu0 0.0
        %2251 = vmatprep.subr.mxu0 0.0
        %2252 = vmatpush1.msra.mxu0 0.0
        %2253 = vmatprep.subr.mxu0 0.0
        %2254 = vmatpush1.msra.mxu0 0.0
        %2255 = vmatprep.subr.mxu0 0.0
        %2256 = vmatpush1.msra.mxu0 0.0
        %2257 = vmatprep.subr.mxu0 0.0
        %2258 = vmatpush1.msra.mxu0 0.0
        %2259 = vmatprep.subr.mxu0 0.0
        %2260 = vmatpush1.msra.mxu0 0.0
        %2261 = vmatprep.mubr.f32.mxu0 0.0
        %v2262 = vand.u32 %v1767, 4294901760
        %2263 = vmatmul.mubr.f32.gmra.mrb[0].mxu0 %v2262
        %v2264 = vpop.f32.mrb[0].mxu0
        %v2265 = vadd.f32 %v2186, %v2264
        %v2266 = vpop.f32.mrb[0].mxu0
        %2267 = vmatprep.mubr.f32.mxu0 0.0
        %v2268 = vand.u32 %v1770, 4294901760
        %2269 = vmatmul.mubr.f32.gmra.mrb[0].mxu0 %v2268
        %v2270 = vpop.f32.mrb[0].mxu0
        %v2271 = vadd.f32 %v2192, %v2270
        %v2272 = vpop.f32.mrb[0].mxu0
        %2273 = vdwg.mxu0
        %v2274 = vmul.f32 %v741, %v205
        %v2275 = vmul.f32 %v747, %v206
        %v2276 = vmul.f32 %v1249, %v207
        %v2277 = vmul.f32 %v1255, %v208
        %v2278 = vmul.f32 %v1757, %v209
        %v2279 = vmul.f32 %v1763, %v210
        %v2280 = vmul.f32 %v2265, %v211
        %v2281 = vmul.f32 %v2271, %v212
        %v2282 = vsel %vm217, %v2274, 0.0
        %2283 = vadd.xlane.f32.xlu0 %v2282
        %v2284 = vpop.xlane.xlu0 %2283
        %v2285 = vsel %vm217, %v2275, 0.0
        %2286 = vadd.xlane.f32.xlu0 %v2285
        %v2287 = vpop.xlane.xlu0 %2286
        %v2288 = vsel %vm217, %v2276, 0.0
        %2289 = vadd.xlane.f32.xlu0 %v2288
        %v2290 = vpop.xlane.xlu0 %2289
        %v2291 = vsel %vm217, %v2277, 0.0
        %2292 = vadd.xlane.f32.xlu0 %v2291
        %v2293 = vpop.xlane.xlu0 %2292
        %v2294 = vsel %vm217, %v2278, 0.0
        %2295 = vadd.xlane.f32.xlu0 %v2294
        %v2296 = vpop.xlane.xlu0 %2295
        %v2297 = vsel %vm217, %v2279, 0.0
        %2298 = vadd.xlane.f32.xlu0 %v2297
        %v2299 = vpop.xlane.xlu0 %2298
        %v2300 = vsel %vm217, %v2280, 0.0
        %2301 = vadd.xlane.f32.xlu0 %v2300
        %v2302 = vpop.xlane.xlu0 %2301
        %v2303 = vsel %vm217, %v2281, 0.0
        %2304 = vadd.xlane.f32.xlu0 %v2303
        %v2305 = vpop.xlane.xlu0 %2304
        %v2306 = vmul.f32 %v2284, 0.5
        %v2307 = vmul.f32 %v2287, 0.5
        %v2308 = vmul.f32 %v2290, 0.5
        %v2309 = vmul.f32 %v2293, 0.5
        %v2310 = vmul.f32 %v2296, 0.5
        %v2311 = vmul.f32 %v2299, 0.5
        %v2312 = vmul.f32 %v2302, 0.5
        %v2313 = vmul.f32 %v2305, 0.5
        %v2314 = vadd.f32 %v220, %v2306
        %v2315 = vadd.f32 %v223, %v2307
        %v2316 = vadd.f32 %v226, %v2308
        %v2317 = vadd.f32 %v229, %v2309
        %v2318 = vadd.f32 %v232, %v2310
        %v2319 = vadd.f32 %v235, %v2311
        %v2320 = vadd.f32 %v238, %v2312
        %v2321 = vadd.f32 %v241, %v2313
        %v2322 = vlog2.pop %v220
        %v2323 = vmul.f32 %v2322, 0.6931472
        %v2324 = vlog2.pop %v223
        %v2325 = vmul.f32 %v2324, 0.6931472
        %v2326 = vlog2.pop %v226
        %v2327 = vmul.f32 %v2326, 0.6931472
        %v2328 = vlog2.pop %v229
        %v2329 = vmul.f32 %v2328, 0.6931472
        %v2330 = vlog2.pop %v232
        %v2331 = vmul.f32 %v2330, 0.6931472
        %v2332 = vlog2.pop %v235
        %v2333 = vmul.f32 %v2332, 0.6931472
        %v2334 = vlog2.pop %v238
        %v2335 = vmul.f32 %v2334, 0.6931472
        %v2336 = vlog2.pop %v241
        %v2337 = vmul.f32 %v2336, 0.6931472
        %v2338 = vlog2.pop %v2314
        %v2339 = vmul.f32 %v2338, 0.6931472
        %v2340 = vlog2.pop %v2315
        %v2341 = vmul.f32 %v2340, 0.6931472
        %v2342 = vlog2.pop %v2316
        %v2343 = vmul.f32 %v2342, 0.6931472
        %v2344 = vlog2.pop %v2317
        %v2345 = vmul.f32 %v2344, 0.6931472
        %v2346 = vlog2.pop %v2318
        %v2347 = vmul.f32 %v2346, 0.6931472
        %v2348 = vlog2.pop %v2319
        %v2349 = vmul.f32 %v2348, 0.6931472
        %v2350 = vlog2.pop %v2320
        %v2351 = vmul.f32 %v2350, 0.6931472
        %v2352 = vlog2.pop %v2321
        %v2353 = vmul.f32 %v2352, 0.6931472
        %v2354 = vmul.f32 %v2323, %v2323
        %v2355 = vmul.f32 %v2325, %v2325
        %v2356 = vmul.f32 %v2327, %v2327
        %v2357 = vmul.f32 %v2329, %v2329
        %v2358 = vmul.f32 %v2331, %v2331
        %v2359 = vmul.f32 %v2333, %v2333
        %v2360 = vmul.f32 %v2335, %v2335
        %v2361 = vmul.f32 %v2337, %v2337
        %v2362 = vmul.f32 %v2323, %v2339
        %v2363 = vmul.f32 %v2325, %v2341
        %v2364 = vmul.f32 %v2327, %v2343
        %v2365 = vmul.f32 %v2329, %v2345
        %v2366 = vmul.f32 %v2331, %v2347
        %v2367 = vmul.f32 %v2333, %v2349
        %v2368 = vmul.f32 %v2335, %v2351
        %v2369 = vmul.f32 %v2337, %v2353
        %v2378 = vlaneseq
        %v2379 = vand.u32 %v2378, 127
        %v2380 = vlaneseq
        %v2381 = vshrl.u32 %v2380, 7
        %v2382 = vsub.s32 %v2379, %v2381
        %v2383 = vrot.slane %v2323, %v2382
        %v2384 = vadd.s32 %v2379, 4294967288
        %v2385 = vlaneseq
        %v2386 = vshrl.u32 %v2385, 7
        %v2387 = vsub.s32 %v2384, %v2386
        %v2388 = vrot.slane %v2325, %v2387
        %vm2389 = vcmask 130112
        %v2390 = vsel %vm2389, %v2388, %v2383
        %v2391 = vlaneseq
        %v2392 = vshrl.u32 %v2391, 7
        %v2393 = vsub.s32 %v2379, %v2392
        %v2394 = vrot.slane %v2327, %v2393
        %v2395 = vlaneseq
        %v2396 = vshrl.u32 %v2395, 7
        %v2397 = vsub.s32 %v2384, %v2396
        %v2398 = vrot.slane %v2329, %v2397
        %v2399 = vsel %vm2389, %v2398, %v2394
        %v2400 = vlaneseq
        %v2401 = vshrl.u32 %v2400, 7
        %v2402 = vsub.s32 %v2379, %v2401
        %v2403 = vrot.slane %v2331, %v2402
        %v2404 = vlaneseq
        %v2405 = vshrl.u32 %v2404, 7
        %v2406 = vsub.s32 %v2384, %v2405
        %v2407 = vrot.slane %v2333, %v2406
        %v2408 = vsel %vm2389, %v2407, %v2403
        %v2409 = vlaneseq
        %v2410 = vshrl.u32 %v2409, 7
        %v2411 = vsub.s32 %v2379, %v2410
        %v2412 = vrot.slane %v2335, %v2411
        %v2413 = vlaneseq
        %v2414 = vshrl.u32 %v2413, 7
        %v2415 = vsub.s32 %v2384, %v2414
        %v2416 = vrot.slane %v2337, %v2415
        %v2417 = vsel %vm2389, %v2416, %v2412
        %vm2418 = vcmask 1041409
        %v2419 = vsel %vm2418, %v2399, %v2390
        %vm2420 = vcmask 1042434
        %v2421 = vsel %vm2420, %v2408, %v2419
        %vm2422 = vcmask 1043459
        %v2423 = vsel %vm2422, %v2417, %v2421
        %v2433 = vlaneseq
        %v2434 = vshrl.u32 %v2433, 7
        %v2435 = vsub.s32 %v2379, %v2434
        %v2436 = vrot.slane %v2354, %v2435
        %v2437 = vlaneseq
        %v2438 = vshrl.u32 %v2437, 7
        %v2439 = vsub.s32 %v2384, %v2438
        %v2440 = vrot.slane %v2355, %v2439
        %v2441 = vsel %vm2389, %v2440, %v2436
        %v2442 = vlaneseq
        %v2443 = vshrl.u32 %v2442, 7
        %v2444 = vsub.s32 %v2379, %v2443
        %v2445 = vrot.slane %v2356, %v2444
        %v2446 = vlaneseq
        %v2447 = vshrl.u32 %v2446, 7
        %v2448 = vsub.s32 %v2384, %v2447
        %v2449 = vrot.slane %v2357, %v2448
        %v2450 = vsel %vm2389, %v2449, %v2445
        %v2451 = vlaneseq
        %v2452 = vshrl.u32 %v2451, 7
        %v2453 = vsub.s32 %v2379, %v2452
        %v2454 = vrot.slane %v2358, %v2453
        %v2455 = vlaneseq
        %v2456 = vshrl.u32 %v2455, 7
        %v2457 = vsub.s32 %v2384, %v2456
        %v2458 = vrot.slane %v2359, %v2457
        %v2459 = vsel %vm2389, %v2458, %v2454
        %v2460 = vlaneseq
        %v2461 = vshrl.u32 %v2460, 7
        %v2462 = vsub.s32 %v2379, %v2461
        %v2463 = vrot.slane %v2360, %v2462
        %v2464 = vlaneseq
        %v2465 = vshrl.u32 %v2464, 7
        %v2466 = vsub.s32 %v2384, %v2465
        %v2467 = vrot.slane %v2361, %v2466
        %v2468 = vsel %vm2389, %v2467, %v2463
        %vm2469 = vcmask 1045509
        %v2470 = vsel %vm2469, %v2450, %v2441
        %vm2471 = vcmask 1046534
        %v2472 = vsel %vm2471, %v2459, %v2470
        %vm2473 = vcmask 1047559
        %v2474 = vsel %vm2473, %v2468, %v2472
        %v2484 = vlaneseq
        %v2485 = vshrl.u32 %v2484, 7
        %v2486 = vsub.s32 %v2379, %v2485
        %v2487 = vrot.slane %v2339, %v2486
        %v2488 = vlaneseq
        %v2489 = vshrl.u32 %v2488, 7
        %v2490 = vsub.s32 %v2384, %v2489
        %v2491 = vrot.slane %v2341, %v2490
        %v2492 = vsel %vm2389, %v2491, %v2487
        %v2493 = vlaneseq
        %v2494 = vshrl.u32 %v2493, 7
        %v2495 = vsub.s32 %v2379, %v2494
        %v2496 = vrot.slane %v2343, %v2495
        %v2497 = vlaneseq
        %v2498 = vshrl.u32 %v2497, 7
        %v2499 = vsub.s32 %v2384, %v2498
        %v2500 = vrot.slane %v2345, %v2499
        %v2501 = vsel %vm2389, %v2500, %v2496
        %v2502 = vlaneseq
        %v2503 = vshrl.u32 %v2502, 7
        %v2504 = vsub.s32 %v2379, %v2503
        %v2505 = vrot.slane %v2347, %v2504
        %v2506 = vlaneseq
        %v2507 = vshrl.u32 %v2506, 7
        %v2508 = vsub.s32 %v2384, %v2507
        %v2509 = vrot.slane %v2349, %v2508
        %v2510 = vsel %vm2389, %v2509, %v2505
        %v2511 = vlaneseq
        %v2512 = vshrl.u32 %v2511, 7
        %v2513 = vsub.s32 %v2379, %v2512
        %v2514 = vrot.slane %v2351, %v2513
        %v2515 = vlaneseq
        %v2516 = vshrl.u32 %v2515, 7
        %v2517 = vsub.s32 %v2384, %v2516
        %v2518 = vrot.slane %v2353, %v2517
        %v2519 = vsel %vm2389, %v2518, %v2514
        %v2520 = vsel %vm2418, %v2501, %v2492
        %v2521 = vsel %vm2420, %v2510, %v2520
        %v2522 = vsel %vm2422, %v2519, %v2521
        %v2532 = vlaneseq
        %v2533 = vshrl.u32 %v2532, 7
        %v2534 = vsub.s32 %v2379, %v2533
        %v2535 = vrot.slane %v2362, %v2534
        %v2536 = vlaneseq
        %v2537 = vshrl.u32 %v2536, 7
        %v2538 = vsub.s32 %v2384, %v2537
        %v2539 = vrot.slane %v2363, %v2538
        %v2540 = vsel %vm2389, %v2539, %v2535
        %v2541 = vlaneseq
        %v2542 = vshrl.u32 %v2541, 7
        %v2543 = vsub.s32 %v2379, %v2542
        %v2544 = vrot.slane %v2364, %v2543
        %v2545 = vlaneseq
        %v2546 = vshrl.u32 %v2545, 7
        %v2547 = vsub.s32 %v2384, %v2546
        %v2548 = vrot.slane %v2365, %v2547
        %v2549 = vsel %vm2389, %v2548, %v2544
        %v2550 = vlaneseq
        %v2551 = vshrl.u32 %v2550, 7
        %v2552 = vsub.s32 %v2379, %v2551
        %v2553 = vrot.slane %v2366, %v2552
        %v2554 = vlaneseq
        %v2555 = vshrl.u32 %v2554, 7
        %v2556 = vsub.s32 %v2384, %v2555
        %v2557 = vrot.slane %v2367, %v2556
        %v2558 = vsel %vm2389, %v2557, %v2553
        %v2559 = vlaneseq
        %v2560 = vshrl.u32 %v2559, 7
        %v2561 = vsub.s32 %v2379, %v2560
        %v2562 = vrot.slane %v2368, %v2561
        %v2563 = vlaneseq
        %v2564 = vshrl.u32 %v2563, 7
        %v2565 = vsub.s32 %v2384, %v2564
        %v2566 = vrot.slane %v2369, %v2565
        %v2567 = vsel %vm2389, %v2566, %v2562
        %v2568 = vsel %vm2469, %v2549, %v2540
        %v2569 = vsel %vm2471, %v2558, %v2568
        %v2570 = vsel %vm2473, %v2567, %v2569
        %vm2572 = vcmask 1043456
        %v2573 = vsel %vm2572, %v2423, %v2474
        %v2574 = vsel %vm2572, %v2522, %v2570
        %v2575 = vsel %vm217, %v2573, 0.0
        %2576 = vadd.xlane.f32.xlu0 %v2575
        %v2577 = vpop.xlane.xlu0 %2576
        %v2578 = vsel %vm217, %v2574, 0.0
        %2579 = vadd.xlane.f32.xlu0 %v2578
        %v2580 = vpop.xlane.xlu0 %2579
        %v2581 = vmul.f32 %v2577, 16.0
        %v2582 = vmul.f32 %v2577, %v2577
        %v2584 = vrot.slane %v2582, 4
        %v2586 = vsub.f32 %v2581, %v2584
        %v2588 = vrot.slane %v2580, 4
        %v2590 = vmul.f32 %v2577, %v2588
        %v2592 = vrot.slane %v2590, 4
        %v2594 = vsub.f32 %v2590, %v2592
        %v2595 = vrcp.pop %v2586
        %v2596 = vmul.f32 %v2594, %v2595
        %v2597 = vmul.f32 %v2580, 16.0
        %v2598 = vmul.f32 %v2577, %v2580
        %v2600 = vrot.slane %v2598, 4
        %v2602 = vsub.f32 %v2597, %v2600
        %v2603 = vmul.f32 %v2602, %v2595
        %2605 = vset.pattern.permute.xlu0 0
        %2606 = vperm.xlu0 %2605, %v2603
        %v2607 = vpop.permute.xlu0 %2606
        %v2609 = vsel %vm2469, %v2399, %v2390
        %v2610 = vsel %vm2471, %v2408, %v2609
        %v2611 = vsel %vm2473, %v2417, %v2610
        %v2613 = vmul.f32 %v2607, %v2611
        %2615 = vset.pattern.permute.xlu0 0
        %2616 = vperm.xlu0 %2615, %v2596
        %v2617 = vpop.permute.xlu0 %2616
        %v2619 = vadd.f32 %v2617, %v2613
        %v2620 = vmul.f32 %v2619, 1.442695
        %v2621 = vpow.pop %v2620
        %v2630 = vlaneseq
        %v2631 = vshrl.u32 %v2630, 7
        %v2632 = vsub.s32 %v2379, %v2631
        %v2633 = vrot.slane %v2314, %v2632
        %v2634 = vlaneseq
        %v2635 = vshrl.u32 %v2634, 7
        %v2636 = vsub.s32 %v2384, %v2635
        %v2637 = vrot.slane %v2315, %v2636
        %v2638 = vsel %vm2389, %v2637, %v2633
        %v2639 = vlaneseq
        %v2640 = vshrl.u32 %v2639, 7
        %v2641 = vsub.s32 %v2379, %v2640
        %v2642 = vrot.slane %v2316, %v2641
        %v2643 = vlaneseq
        %v2644 = vshrl.u32 %v2643, 7
        %v2645 = vsub.s32 %v2384, %v2644
        %v2646 = vrot.slane %v2317, %v2645
        %v2647 = vsel %vm2389, %v2646, %v2642
        %v2648 = vlaneseq
        %v2649 = vshrl.u32 %v2648, 7
        %v2650 = vsub.s32 %v2379, %v2649
        %v2651 = vrot.slane %v2318, %v2650
        %v2652 = vlaneseq
        %v2653 = vshrl.u32 %v2652, 7
        %v2654 = vsub.s32 %v2384, %v2653
        %v2655 = vrot.slane %v2319, %v2654
        %v2656 = vsel %vm2389, %v2655, %v2651
        %v2657 = vlaneseq
        %v2658 = vshrl.u32 %v2657, 7
        %v2659 = vsub.s32 %v2379, %v2658
        %v2660 = vrot.slane %v2320, %v2659
        %v2661 = vlaneseq
        %v2662 = vshrl.u32 %v2661, 7
        %v2663 = vsub.s32 %v2384, %v2662
        %v2664 = vrot.slane %v2321, %v2663
        %v2665 = vsel %vm2389, %v2664, %v2660
        %v2666 = vsel %vm2469, %v2647, %v2638
        %v2667 = vsel %vm2471, %v2656, %v2666
        %v2668 = vsel %vm2473, %v2665, %v2667
        %v2670 = vsub.f32 %v2621, %v2668
        %v2672 = vcombine.high %v2670, %v2670
        %v2674 = vunpack.c.l.s4 1966171168
        %v2675 = vunpack.c.0.s8 %v2674
        %v2676 = vlaneseq
        %v2677 = vshrl.u32 %v2676, 7
        %v2678 = vsub.s32 %v2675, %v2677
        %v2679 = vrot.slane %v2672, %v2678
        %v2680 = vcombine.high %v2679, %v2679
        %v2682 = vunpack.c.l.s4 1966171168
        %v2683 = vunpack.c.0.s8 %v2682
        %v2684 = vlaneseq
        %v2685 = vshrl.u32 %v2684, 7
        %v2686 = vsub.s32 %v2683, %v2685
        %v2687 = vrot.slane %v2679, %v2686
        %v2689 = vunpack.c.l.s4 1966171168
        %v2690 = vunpack.c.0.s8 %v2689
        %v2691 = vlaneseq
        %v2692 = vshrl.u32 %v2691, 7
        %v2693 = vsub.s32 %v2690, %v2692
        %v2694 = vrot.slane %v2680, %v2693
        %v2695 = vcombine.high %v2687, %v2687
        %v2696 = vcombine.high %v2694, %v2694
        %v2701 = vmul.f32 %v213, %v2687
        %v2702 = vmul.f32 %v214, %v2694
        %v2703 = vmul.f32 %v215, %v2695
        %v2704 = vmul.f32 %v216, %v2696
        %v2705 = vmul.f32 %v2701, %v2687
        %v2706 = vmul.f32 %v2702, %v2694
        %v2707 = vmul.f32 %v2703, %v2695
        %v2708 = vmul.f32 %v2704, %v2696
        %v2713 = vcombine.low %v2705, %v2706
        %v2714 = vcombine.low %v2707, %v2708
        %v2716 = vunpack.c.l.s4 1966171168
        %v2717 = vunpack.c.0.s8 %v2716
        %v2718 = vlaneseq
        %v2719 = vshrl.u32 %v2718, 7
        %v2720 = vsub.s32 %v2717, %v2719
        %v2721 = vrot.slane %v2713, %v2720
        %v2723 = vunpack.c.l.s4 1966171168
        %v2724 = vunpack.c.0.s8 %v2723
        %v2725 = vlaneseq
        %v2726 = vshrl.u32 %v2725, 7
        %v2727 = vsub.s32 %v2724, %v2726
        %v2728 = vrot.slane %v2714, %v2727
        %v2729 = vcombine.low %v2721, %v2728
        %v2731 = vunpack.c.l.s4 1966171168
        %v2732 = vunpack.c.0.s8 %v2731
        %v2733 = vlaneseq
        %v2734 = vshrl.u32 %v2733, 7
        %v2735 = vsub.s32 %v2732, %v2734
        %v2736 = vrot.slane %v2729, %v2735
        %vm2738 = vcmask 125952
        %v2739 = vsel %vm2738, %v2736, 0.0
        %2740 = vadd.xlane.f32.xlu0 %v2739
        %v2741 = vpop.xlane.xlu0 %2740
        %vm2742 = vcmask 3072
        %2743 = vst.msk [vmem:[%s204] sm:$0xf] %vm2742, %v2741
        %p2744 = scmp.lt.s32.totalorder %s19, 1
        %s2745 = scalar_select %p2744, %s19, 1
        %s2746 = smul.addr %s2745, 4
        %s2747 = scalar_lea.vmem %s2, %s2746
        // Predicated region
        $region37: #{tpu_custom_call.1} parent=27 // pred_check
          %p2748 = pneg %p89
        $region38: #{tpu_custom_call.1} parent=27 // pred_check_branch
          %2750 = sbr.rel (%p2748) target = $region40
        $region39: #{tpu_custom_call.1} parent=27 // pred_region
          _
        $region40: #{tpu_custom_call.1} parent=27 // pred_fallthru
          _
      $region28: #{tpu_custom_call.1} parent=5 // pred_fallthru
        _
      %p2751 = scmp.le.s32.totalorder 2, %s14
      // Predicated region
      $region41: #{tpu_custom_call.1} parent=5 // pred_check
        %p2752 = pneg %p2751
      $region42: #{tpu_custom_call.1} parent=5 // pred_check_branch
        %2754 = sbr.rel (%p2752) target = $region44
      $region43: #{tpu_custom_call.1} parent=5 // pred_region
        %s2755 = ssub.s32 %s14, 2
        // Predicated region
        $region45: #{tpu_custom_call.1} parent=43 // pred_check
          %p2756 = pneg %p95
        $region46: #{tpu_custom_call.1} parent=43 // pred_check_branch
          %2758 = sbr.rel (%p2756) target = $region48
        $region47: #{tpu_custom_call.1} parent=43 // pred_region
          %p2759 = scmp.lt.s32.totalorder %s20, 1
          %s2760 = scalar_select %p2759, %s20, 1
          %s2761 = smul.addr %s2760, 4
          %s2762 = scalar_lea.vmem %s2, %s2761
        $region48: #{tpu_custom_call.1} parent=43 // pred_fallthru
          _
      $region44: #{tpu_custom_call.1} parent=5 // pred_fallthru
        _
    $region6: #{tpu_custom_call.1} parent=1 // loop_footer
      %s18 = sadd.s32 1, %s14
    $region7: #{tpu_custom_call.1} parent=1 // loop_footer_branch
      %13 = sbr.rel target = $region3
    $region8: #{tpu_custom_call.1} parent=1 // loop_exit
      _
    %2763 = vsyncpa [#allocation3], 1
    %s2764 = scalar_lea.sflag [#allocation3], 1
    %2765 = vsyncpa %s2764, 1
    %2766 = vsyncpa [#allocation5], 1
    %s2767 = scalar_lea.sflag [#allocation5], 1
    %2768 = vsyncpa %s2767, 1

</llo_original>
